<compile_context>
chip_gen: v7x
topology: tpu7x:2x2x1
jax: 0.10.0
libtpu: 0.0.40
codegen_flags: <defaults>
</compile_context>

<pallas_src>
import jax
import jax.numpy as jnp
from jax.experimental import pallas as pl
from jax.experimental.pallas import tpu as pltpu


def _round_up(a, b):
    return (a + b - 1) // b * b


def _geb_kernel(x_ref, v_ref, w12t_ref, wu1t_ref, b1_ref, wu2t_ref, b2_ref,
                x_out_ref, v_out_ref):
    tn, H = x_ref.shape
    O = x_out_ref.shape[1]
    cd = w12t_ref.dtype  # compute dtype (bf16)

    # Cast in VMEM (inputs arrive as f32 straight from HBM).  The value reshape
    # (3, tn, H) -> (3*tn, H) is layout-free because tn is a multiple of the
    # bf16 sublane pack (16).
    v_flat = v_ref[...].astype(cd).reshape(3 * tn, H)            # (3*tn, H) bf16
    x_b = x_ref[...].astype(cd)                                  # (tn, H)   bf16

    # Fused v-path matmul: one MXU pass with N = H + O (fills 256-wide MXUs).
    vp12 = jnp.dot(v_flat, w12t_ref[...],
                   preferred_element_type=jnp.float32)           # (3*tn, H+O) f32
    vp = vp12[:, :H]                                             # vec1_proj(v)
    vec2 = vp12[:, H:]                                           # vec2_proj(v)

    vec1 = jnp.sqrt(vp[0:tn] * vp[0:tn]
                    + vp[tn:2 * tn] * vp[tn:2 * tn]
                    + vp[2 * tn:3 * tn] * vp[2 * tn:3 * tn])     # (tn, H) f32

    # update_net layer 1, fused along K = 2H (concat is at the H-lane boundary).
    xv = jnp.concatenate([x_b, vec1.astype(cd)], axis=-1)        # (tn, 2H) bf16
    h = jnp.dot(xv, wu1t_ref[...],
                preferred_element_type=jnp.float32) + b1_ref[...]
    h = h * jax.nn.sigmoid(h)                                    # SiLU, f32

    # update_net layer 2, fused along N = 2O; split at the lane-aligned column O.
    y = jnp.dot(h.astype(cd), wu2t_ref[...],
                preferred_element_type=jnp.float32) + b2_ref[...]
    yx = y[:, :O]
    yv = y[:, O:]

    x_out_ref[...] = (yx * jax.nn.sigmoid(yx)).astype(x_out_ref.dtype)
    for d in range(3):
        v_out_ref[d] = (yv * vec2[d * tn:(d + 1) * tn]).astype(v_out_ref.dtype)


def gated_equivariant_block(x, v, params, *, tile_n=512,
                            compute_dtype=jnp.bfloat16,
                            out_dtype=jnp.float32):
    """x: (N, H) f32;  v: (3, N, H) f32.  Returns (x_out (N,O), v_out (3,N,O))."""
    N, H = x.shape
    assert v.shape == (3, N, H)
    O = params["w12t"].shape[1] - H

    # bf16 packs 16 rows per vreg -> keep tile_n a multiple of 16 so the in-kernel
    # (3, tn, H) -> (3*tn, H) reshape is layout-free.  Cap the tile so the grid
    # has >= 2 steps when N allows it (v7x runs 2 TensorCores on the parallel axis).
    align = 16
    tn = _round_up(min(tile_n, max(-(-N // 2), 1)), align)
    tn = max(align, min(tn, _round_up(N, align)))
    grid = (pl.cdiv(N, tn),)   # no jnp.pad: Pallas masks the ragged last tile

    # Weights are small and reused every tile -> pre-cast once; biases stay f32.
    w12t = params["w12t"].astype(compute_dtype)                  # (H, H+O)
    wu1t = params["wu1t"].astype(compute_dtype)                  # (2H, H)
    wu2t = params["wu2t"].astype(compute_dtype)                  # (H, 2O)
    b1 = params["b1"].astype(jnp.float32).reshape(1, H)
    b2 = params["b2"].astype(jnp.float32).reshape(1, 2 * O)

    full = lambda i: (0, 0)
    in_specs = [
        pl.BlockSpec((tn, H), lambda i: (i, 0)),                 # x   (f32)
        pl.BlockSpec((3, tn, H), lambda i: (0, i, 0)),           # v   (f32)
        pl.BlockSpec((H, H + O), full),                          # [W1^T | W2^T]
        pl.BlockSpec((2 * H, H), full),                          # Wu1^T
        pl.BlockSpec((1, H), full),                              # b1
        pl.BlockSpec((H, 2 * O), full),                          # Wu2^T
        pl.BlockSpec((1, 2 * O), full),                          # b2
    ]
    out_specs = (
        pl.BlockSpec((tn, O), lambda i: (i, 0)),                 # x_out
        pl.BlockSpec((3, tn, O), lambda i: (0, i, 0)),           # v_out
    )
    out_shape = (jax.ShapeDtypeStruct((N, O), out_dtype),
                 jax.ShapeDtypeStruct((3, N, O), out_dtype))

    wbpe = jnp.dtype(compute_dtype).itemsize
    obpe = jnp.dtype(out_dtype).itemsize
    cost = pl.CostEstimate(
        flops=int(10 * N * H * (H + O)),
        transcendentals=int(2 * N * (H + O)),
        bytes_accessed=int(4 * N * H * 4                         # x + 3 v components (f32)
                           + 3 * H * (H + O) * wbpe              # weights (bf16)
                           + (H + 2 * O) * 4                     # biases
                           + 4 * N * O * obpe),                  # x_out + v_out
    )

    x_out, v_out = pl.pallas_call(
        _geb_kernel,
        grid_spec=pltpu.PrefetchScalarGridSpec(
            num_scalar_prefetch=0,
            grid=grid,
            in_specs=in_specs,
            out_specs=out_specs,
        ),
        out_shape=out_shape,
        compiler_params=pltpu.CompilerParams(
            dimension_semantics=("parallel",),
        ),
        cost_estimate=cost,
    )(x, v, w12t, wu1t, b1, wu2t, b2)

    return x_out, v_out


def make_params(key, hidden_channels, out_channels, dtype=jnp.float32):
    """Xavier-uniform init matching the torch module; weights pre-transposed/fused."""
    H, O = hidden_channels, out_channels
    ks = jax.random.split(key, 4)

    def xavier(k, shape):  # (out_features, in_features), torch convention
        fan_out, fan_in = shape
        limit = (6.0 / (fan_in + fan_out)) ** 0.5
        return jax.random.uniform(k, shape, dtype, -limit, limit)

    w1 = xavier(ks[0], (H, H))            # vec1_proj.weight
    w2 = xavier(ks[1], (O, H))            # vec2_proj.weight
    wu1 = xavier(ks[2], (H, 2 * H))       # update_net[0].weight
    wu2 = xavier(ks[3], (2 * O, H))       # update_net[2].weight

    return {
        "w12t": jnp.concatenate([w1.T, w2.T], axis=1),   # (H, H+O)
        "wu1t": wu1.T,                                   # (2H, H)
        "b1": jnp.zeros((1, H), dtype),
        "wu2t": wu2.T,                                   # (H, 2O)
        "b2": jnp.zeros((1, 2 * O), dtype),
    }


def reference(x, v, p):
    """Pure-f32 JAX reference matching the torch module forward."""
    H = x.shape[1]
    w12t = p["w12t"]
    vp = jnp.einsum("dnh,hk->dnk", v, w12t[:, :H])
    vec2 = jnp.einsum("dnh,ho->dno", v, w12t[:, H:])
    vec1 = jnp.sqrt(jnp.sum(vp * vp, axis=0))
    h = jnp.concatenate([x, vec1], axis=-1) @ p["wu1t"] + p["b1"]
    h = h * jax.nn.sigmoid(h)
    y = h @ p["wu2t"] + p["b2"]
    O = y.shape[1] // 2
    yx, yv = y[:, :O], y[:, O:]
    return yx * jax.nn.sigmoid(yx), yv[None, :, :] * vec2


if __name__ == "__main__":
    N, H, O = 256, 128, 128       # lane-dense channels; grid of 2 parallel tiles
    key = jax.random.PRNGKey(0)
    kx, kv, kp = jax.random.split(key, 3)

    x = jax.random.normal(kx, (N, H), jnp.float32)
    v = jax.random.normal(kv, (3, N, H), jnp.float32)   # layout: (3, N, H)
    params = make_params(kp, H, O)

    x_out, v_out = gated_equivariant_block(x, v, params)
    jax.block_until_ready((x_out, v_out))

    x_exp, v_exp = reference(x, v, params)
    assert x_out.shape == (N, O) and v_out.shape == (3, N, O)
    assert jnp.allclose(x_out, x_exp, atol=5e-2, rtol=5e-2)
    assert jnp.allclose(v_out, v_exp, atol=5e-2, rtol=5e-2)

    print("KERNEL_OK")
</pallas_src>

<mosaic_0001>
module attributes {stable_mosaic.version = 11 : i64} {
  func.func @_geb_kernel(%arg0: i32, %arg1: memref<128x128xf32, #tpu.memory_space<vmem>>, %arg2: memref<3x128x128xf32, #tpu.memory_space<vmem>>, %arg3: memref<128x256xbf16, #tpu.memory_space<vmem>>, %arg4: memref<256x128xbf16, #tpu.memory_space<vmem>>, %arg5: memref<1x128xf32, #tpu.memory_space<vmem>>, %arg6: memref<128x256xbf16, #tpu.memory_space<vmem>>, %arg7: memref<1x256xf32, #tpu.memory_space<vmem>>, %arg8: memref<128x128xf32, #tpu.memory_space<vmem>>, %arg9: memref<3x128x128xf32, #tpu.memory_space<vmem>>) attributes {dimension_semantics = [#tpu.dimension_semantics<parallel>], iteration_bounds = array<i64: 2>, scalar_prefetch = 0 : i64, scratch_operands = 0 : i64, tpu.core_type = #tpu.core_type<tc>, window_params = [{transform_indices = @transform_0, window_bounds = array<i64: 128, 128>}, {transform_indices = @transform_1, window_bounds = array<i64: 3, 128, 128>}, {pipeline_mode = #tpu.pipeline_mode<synchronous>, transform_indices = @transform_2, window_bounds = array<i64: 128, 256>}, {pipeline_mode = #tpu.pipeline_mode<synchronous>, transform_indices = @transform_3, window_bounds = array<i64: 256, 128>}, {pipeline_mode = #tpu.pipeline_mode<synchronous>, transform_indices = @transform_4, window_bounds = array<i64: 1, 128>}, {pipeline_mode = #tpu.pipeline_mode<synchronous>, transform_indices = @transform_5, window_bounds = array<i64: 128, 256>}, {pipeline_mode = #tpu.pipeline_mode<synchronous>, transform_indices = @transform_6, window_bounds = array<i64: 1, 256>}, {transform_indices = @transform_7, window_bounds = array<i64: 128, 128>}, {transform_indices = @transform_8, window_bounds = array<i64: 3, 128, 128>}]} {
    %c0 = arith.constant 0 : index
    %c0_0 = arith.constant 0 : index
    %c0_1 = arith.constant 0 : index
    %0 = vector.load %arg2[%c0, %c0_0, %c0_1] : memref<3x128x128xf32, #tpu.memory_space<vmem>>, vector<3x128x128xf32>
    %1 = arith.truncf %0 : vector<3x128x128xf32> to vector<3x128x128xbf16>
    %2 = vector.shape_cast %1 : vector<3x128x128xbf16> to vector<384x128xbf16>
    %c0_2 = arith.constant 0 : index
    %c0_3 = arith.constant 0 : index
    %3 = vector.load %arg1[%c0_2, %c0_3] : memref<128x128xf32, #tpu.memory_space<vmem>>, vector<128x128xf32>
    %4 = arith.truncf %3 : vector<128x128xf32> to vector<128x128xbf16>
    %c0_4 = arith.constant 0 : index
    %c0_5 = arith.constant 0 : index
    %5 = vector.load %arg3[%c0_4, %c0_5] : memref<128x256xbf16, #tpu.memory_space<vmem>>, vector<128x256xbf16>
    %cst = arith.constant dense<0.000000e+00> : vector<384x256xf32>
    %6 = tpu.matmul %2, %5, %cst {dimension_numbers = #tpu.dot_dimension_numbers<[1], [0], [0], [1], [0, 0, 1, 1], [], []>} : vector<384x128xbf16>, vector<128x256xbf16>, vector<384x256xf32> -> vector<384x256xf32>
    %7 = vector.extract_strided_slice %6 {offsets = [0, 0], sizes = [384, 128], strides = [1, 1]} : vector<384x256xf32> to vector<384x128xf32>
    %8 = vector.extract_strided_slice %6 {offsets = [0, 128], sizes = [384, 128], strides = [1, 1]} : vector<384x256xf32> to vector<384x128xf32>
    %9 = vector.extract_strided_slice %7 {offsets = [0, 0], sizes = [128, 128], strides = [1, 1]} : vector<384x128xf32> to vector<128x128xf32>
    %10 = vector.extract_strided_slice %7 {offsets = [0, 0], sizes = [128, 128], strides = [1, 1]} : vector<384x128xf32> to vector<128x128xf32>
    %11 = arith.mulf %9, %10 : vector<128x128xf32>
    %12 = vector.extract_strided_slice %7 {offsets = [128, 0], sizes = [128, 128], strides = [1, 1]} : vector<384x128xf32> to vector<128x128xf32>
    %13 = vector.extract_strided_slice %7 {offsets = [128, 0], sizes = [128, 128], strides = [1, 1]} : vector<384x128xf32> to vector<128x128xf32>
    %14 = arith.mulf %12, %13 : vector<128x128xf32>
    %15 = arith.addf %11, %14 : vector<128x128xf32>
    %16 = vector.extract_strided_slice %7 {offsets = [256, 0], sizes = [128, 128], strides = [1, 1]} : vector<384x128xf32> to vector<128x128xf32>
    %17 = vector.extract_strided_slice %7 {offsets = [256, 0], sizes = [128, 128], strides = [1, 1]} : vector<384x128xf32> to vector<128x128xf32>
    %18 = arith.mulf %16, %17 : vector<128x128xf32>
    %19 = arith.addf %15, %18 : vector<128x128xf32>
    %20 = math.sqrt %19 : vector<128x128xf32>
    %21 = arith.truncf %20 : vector<128x128xf32> to vector<128x128xbf16>
    %22 = tpu.concatenate %4, %21 in 1 : vector<128x128xbf16>, vector<128x128xbf16> -> vector<128x256xbf16>
    %c0_6 = arith.constant 0 : index
    %c0_7 = arith.constant 0 : index
    %23 = vector.load %arg4[%c0_6, %c0_7] : memref<256x128xbf16, #tpu.memory_space<vmem>>, vector<256x128xbf16>
    %cst_8 = arith.constant dense<0.000000e+00> : vector<128x128xf32>
    %24 = tpu.matmul %22, %23, %cst_8 {dimension_numbers = #tpu.dot_dimension_numbers<[1], [0], [0], [1], [0, 0, 1, 1], [], []>} : vector<128x256xbf16>, vector<256x128xbf16>, vector<128x128xf32> -> vector<128x128xf32>
    %c0_9 = arith.constant 0 : index
    %c0_10 = arith.constant 0 : index
    %25 = vector.load %arg5[%c0_9, %c0_10] : memref<1x128xf32, #tpu.memory_space<vmem>>, vector<1x128xf32>
    %26 = vector.broadcast %25 : vector<1x128xf32> to vector<128x128xf32>
    %27 = arith.addf %24, %26 : vector<128x128xf32>
    %28 = arith.negf %27 : vector<128x128xf32>
    %29 = math.exp %28 : vector<128x128xf32>
    %cst_11 = arith.constant 1.000000e+00 : f32
    %30 = vector.broadcast %cst_11 : f32 to vector<128x128xf32>
    %31 = arith.addf %30, %29 : vector<128x128xf32>
    %32 = arith.divf %30, %31 : vector<128x128xf32>
    %33 = arith.mulf %27, %32 : vector<128x128xf32>
    %34 = arith.truncf %33 : vector<128x128xf32> to vector<128x128xbf16>
    %c0_12 = arith.constant 0 : index
    %c0_13 = arith.constant 0 : index
    %35 = vector.load %arg6[%c0_12, %c0_13] : memref<128x256xbf16, #tpu.memory_space<vmem>>, vector<128x256xbf16>
    %cst_14 = arith.constant dense<0.000000e+00> : vector<128x256xf32>
    %36 = tpu.matmul %34, %35, %cst_14 {dimension_numbers = #tpu.dot_dimension_numbers<[1], [0], [0], [1], [0, 0, 1, 1], [], []>} : vector<128x128xbf16>, vector<128x256xbf16>, vector<128x256xf32> -> vector<128x256xf32>
    %c0_15 = arith.constant 0 : index
    %c0_16 = arith.constant 0 : index
    %37 = vector.load %arg7[%c0_15, %c0_16] : memref<1x256xf32, #tpu.memory_space<vmem>>, vector<1x256xf32>
    %38 = vector.broadcast %37 : vector<1x256xf32> to vector<128x256xf32>
    %39 = arith.addf %36, %38 : vector<128x256xf32>
    %40 = vector.extract_strided_slice %39 {offsets = [0, 0], sizes = [128, 128], strides = [1, 1]} : vector<128x256xf32> to vector<128x128xf32>
    %41 = vector.extract_strided_slice %39 {offsets = [0, 128], sizes = [128, 128], strides = [1, 1]} : vector<128x256xf32> to vector<128x128xf32>
    %42 = arith.negf %40 : vector<128x128xf32>
    %43 = math.exp %42 : vector<128x128xf32>
    %cst_17 = arith.constant 1.000000e+00 : f32
    %44 = vector.broadcast %cst_17 : f32 to vector<128x128xf32>
    %45 = arith.addf %44, %43 : vector<128x128xf32>
    %46 = arith.divf %44, %45 : vector<128x128xf32>
    %47 = arith.mulf %40, %46 : vector<128x128xf32>
    %c0_18 = arith.constant 0 : index
    %c0_19 = arith.constant 0 : index
    %48 = vector.load %arg8[%c0_18, %c0_19] : memref<128x128xf32, #tpu.memory_space<vmem>>, vector<128x128xf32>
    tpu.vector_store %arg8[%c0_18, %c0_19], %47 {strides = array<i32>} : memref<128x128xf32, #tpu.memory_space<vmem>>, vector<128x128xf32>,
    %49 = vector.extract_strided_slice %8 {offsets = [0, 0], sizes = [128, 128], strides = [1, 1]} : vector<384x128xf32> to vector<128x128xf32>
    %50 = arith.mulf %41, %49 : vector<128x128xf32>
    %c0_20 = arith.constant 0 : index
    %c0_21 = arith.constant 0 : index
    %c0_22 = arith.constant 0 : index
    %51 = vector.load %arg9[%c0_20, %c0_21, %c0_22] : memref<3x128x128xf32, #tpu.memory_space<vmem>>, vector<1x128x128xf32>
    %52 = vector.shape_cast %51 : vector<1x128x128xf32> to vector<128x128xf32>
    %53 = vector.shape_cast %50 : vector<128x128xf32> to vector<1x128x128xf32>
    tpu.vector_store %arg9[%c0_20, %c0_21, %c0_22], %53 {strides = array<i32>} : memref<3x128x128xf32, #tpu.memory_space<vmem>>, vector<1x128x128xf32>,
    %54 = vector.extract_strided_slice %8 {offsets = [128, 0], sizes = [128, 128], strides = [1, 1]} : vector<384x128xf32> to vector<128x128xf32>
    %55 = arith.mulf %41, %54 : vector<128x128xf32>
    %c1 = arith.constant 1 : index
    %c0_23 = arith.constant 0 : index
    %c0_24 = arith.constant 0 : index
    %56 = vector.load %arg9[%c1, %c0_23, %c0_24] : memref<3x128x128xf32, #tpu.memory_space<vmem>>, vector<1x128x128xf32>
    %57 = vector.shape_cast %56 : vector<1x128x128xf32> to vector<128x128xf32>
    %58 = vector.shape_cast %55 : vector<128x128xf32> to vector<1x128x128xf32>
    tpu.vector_store %arg9[%c1, %c0_23, %c0_24], %58 {strides = array<i32>} : memref<3x128x128xf32, #tpu.memory_space<vmem>>, vector<1x128x128xf32>,
    %59 = vector.extract_strided_slice %8 {offsets = [256, 0], sizes = [128, 128], strides = [1, 1]} : vector<384x128xf32> to vector<128x128xf32>
    %60 = arith.mulf %41, %59 : vector<128x128xf32>
    %c2 = arith.constant 2 : index
    %c0_25 = arith.constant 0 : index
    %c0_26 = arith.constant 0 : index
    %61 = vector.load %arg9[%c2, %c0_25, %c0_26] : memref<3x128x128xf32, #tpu.memory_space<vmem>>, vector<1x128x128xf32>
    %62 = vector.shape_cast %61 : vector<1x128x128xf32> to vector<128x128xf32>
    %63 = vector.shape_cast %60 : vector<128x128xf32> to vector<1x128x128xf32>
    tpu.vector_store %arg9[%c2, %c0_25, %c0_26], %63 {strides = array<i32>} : memref<3x128x128xf32, #tpu.memory_space<vmem>>, vector<1x128x128xf32>,
    return
  }
  func.func @transform_0(%arg0: i32) -> (i32, i32) {
    %c0_i32 = arith.constant 0 : i32
    %c0_i32_0 = arith.constant 0 : i32
    return %arg0, %c0_i32 : i32, i32
  }
  func.func @transform_1(%arg0: i32) -> (i32, i32, i32) {
    %c0_i32 = arith.constant 0 : i32
    %c0_i32_0 = arith.constant 0 : i32
    %c0_i32_1 = arith.constant 0 : i32
    return %c0_i32, %arg0, %c0_i32_0 : i32, i32, i32
  }
  func.func @transform_2(%arg0: i32) -> (i32, i32) {
    %c0_i32 = arith.constant 0 : i32
    %c0_i32_0 = arith.constant 0 : i32
    %c0_i32_1 = arith.constant 0 : i32
    return %c0_i32, %c0_i32_0 : i32, i32
  }
  func.func @transform_3(%arg0: i32) -> (i32, i32) {
    %c0_i32 = arith.constant 0 : i32
    %c0_i32_0 = arith.constant 0 : i32
    %c0_i32_1 = arith.constant 0 : i32
    return %c0_i32, %c0_i32_0 : i32, i32
  }
  func.func @transform_4(%arg0: i32) -> (i32, i32) {
    %c0_i32 = arith.constant 0 : i32
    %c0_i32_0 = arith.constant 0 : i32
    %c0_i32_1 = arith.constant 0 : i32
    return %c0_i32, %c0_i32_0 : i32, i32
  }
  func.func @transform_5(%arg0: i32) -> (i32, i32) {
    %c0_i32 = arith.constant 0 : i32
    %c0_i32_0 = arith.constant 0 : i32
    %c0_i32_1 = arith.constant 0 : i32
    return %c0_i32, %c0_i32_0 : i32, i32
  }
  func.func @transform_6(%arg0: i32) -> (i32, i32) {
    %c0_i32 = arith.constant 0 : i32
    %c0_i32_0 = arith.constant 0 : i32
    %c0_i32_1 = arith.constant 0 : i32
    return %c0_i32, %c0_i32_0 : i32, i32
  }
  func.func @transform_7(%arg0: i32) -> (i32, i32) {
    %c0_i32 = arith.constant 0 : i32
    %c0_i32_0 = arith.constant 0 : i32
    return %arg0, %c0_i32 : i32, i32
  }
  func.func @transform_8(%arg0: i32) -> (i32, i32, i32) {
    %c0_i32 = arith.constant 0 : i32
    %c0_i32_0 = arith.constant 0 : i32
    %c0_i32_1 = arith.constant 0 : i32
    return %c0_i32, %arg0, %c0_i32_0 : i32, i32, i32
  }
}

</mosaic_0001>

<llo_original>
// kernel: tpu_custom_call.1
$region0: #{tpu_custom_call.1}
  #allocation0 [shape = 'u32[]', space=smem, size = 0x4, offset = 0x4, fixed_abs, tag = 'smem constant byte address 0x4 - core index']
  #allocation1 [shape = 'u32[144,128]{1,0:T(1,128)}', space=vmem, size = 0x12000, scoped, tag = 'internal scratch']
  #allocation14 [shape = 's32[]', space=sflag, size = 0x4, offset = 0, fixed_abs, tag = 'sflag constant byte address 0x0 - dummy sync flag']
  #allocation16 [shape = 's32[]', space=sflag, size = 0x4, offset = 0, fixed_abs, tag = 'sflag constant byte address 0x0 - dummy sync flag']
  %s0 = inlined_call_operand.hbm [shape: f32[256,128], index: 0, kind: input, shape index: {}]
  %s1 = inlined_call_operand.hbm [shape: f32[3,256,128], index: 1, kind: input, shape index: {}]
  %s2 = inlined_call_operand.hbm [shape: bf16[128,256], index: 2, kind: input, shape index: {}]
  %s3 = inlined_call_operand.hbm [shape: bf16[256,128], index: 3, kind: input, shape index: {}]
  %s4 = inlined_call_operand.vmem [shape: f32[1,128], index: 4, kind: input, shape index: {}]
  %s5 = inlined_call_operand.hbm [shape: bf16[128,256], index: 5, kind: input, shape index: {}]
  %s6 = inlined_call_operand.vmem [shape: f32[1,256], index: 6, kind: input, shape index: {}]
  %s7 = inlined_call_operand.hbm [shape: f32[256,128], index: 7, kind: output, shape index: {0}]
  %s8 = inlined_call_operand.hbm [shape: f32[3,256,128], index: 8, kind: output, shape index: {1}]
  %9 = xla_tuple %s7, %s8
  %s10 = sld [smem:[#allocation0]]
  $region89: #{tpu_custom_call.1} parent=0
    _
  %s12 = ssub.s32 1, %s10
  %s13 = scalar_select 0, %s12, %s10
  $region1: #{tpu_custom_call.1} parent=0
    #allocation2 [shape = 'u8[131072]{0}', space=vmem, size = 0x20000, scoped, tag = 'input window, operand 0']
    #allocation3 [shape = 's32[2]{0}', space=sflag, size = 0x8, scoped, tag = 'scoped memory for tpu_custom_call.1']
    #allocation4 [shape = 's32[2]{0}', space=sflag, size = 0x8, scoped, tag = 'scoped memory for tpu_custom_call.1']
    #allocation5 [shape = 'u8[393216]{0}', space=vmem, size = 0x60000, scoped, tag = 'input window, operand 1']
    #allocation6 [shape = 's32[2]{0}', space=sflag, size = 0x8, scoped, tag = 'scoped memory for tpu_custom_call.1']
    #allocation7 [shape = 'u8[65536]{0}', space=vmem, size = 0x10000, scoped, tag = 'input window, operand 2, single buffered']
    #allocation8 [shape = 'u8[65536]{0}', space=vmem, size = 0x10000, scoped, tag = 'input window, operand 3, single buffered']
    #allocation9 [shape = 's32[1]{0}', space=sflag, size = 0x4, scoped, tag = 'scoped memory for tpu_custom_call.1']
    #allocation10 [shape = 'u8[65536]{0}', space=vmem, size = 0x10000, scoped, tag = 'input window, operand 5, single buffered']
    #allocation11 [shape = 'u8[131072]{0}', space=vmem, size = 0x20000, scoped, tag = 'output window, operand 0']
    #allocation12 [shape = 'u8[393216]{0}', space=vmem, size = 0x60000, scoped, tag = 'output window, operand 1']
    #allocation13 [shape = 's32[2]{0}', space=sflag, size = 0x8, scoped, tag = 'scoped memory for tpu_custom_call.1']
    %14 = vsyncpa [#allocation3], 0
    %s15 = scalar_lea.sflag [#allocation3], 1
    %16 = vsyncpa %s15, 0
    %17 = vsyncpa [#allocation6], 0
    %s18 = scalar_lea.sflag [#allocation6], 1
    %19 = vsyncpa %s18, 0
    %20 = vsyncpa [#allocation9], 0
    %21 = vsyncpa [#allocation4], 0
    %s22 = scalar_lea.sflag [#allocation4], 1
    %23 = vsyncpa %s22, 0
    %24 = vsyncpa [#allocation13], 0
    %s25 = scalar_lea.sflag [#allocation13], 1
    %26 = vsyncpa %s25, 0
    loop: start=0, step=1, limit=4
    $region2: #{tpu_custom_call.1} parent=1 // loop_pre_header
      _
    $region3: #{tpu_custom_call.1} parent=1 // loop_header
      %s28 = sphi 0, %s32
      %p29 = scmp.ge.s32.totalorder %s28, 4
      %s38 = sphi 0, %s40
      %s41 = sphi 0, %s38
      %s42 = sphi 0, %s41
      %s58 = sphi 0, %s42
      %s64 = sphi 0, %s66
      %s67 = sphi 0, %s64
      %s68 = sphi 0, %s67
      %s84 = sphi 0, %s68
      %s88 = sphi 0, %s88
      %s90 = sphi 0, %s88
      %s91 = sphi 0, %s90
      %s105 = sphi 0, %s91
      %s109 = sphi 0, %s109
      %s111 = sphi 0, %s109
      %s112 = sphi 0, %s111
      %s126 = sphi 0, %s112
      %s130 = sphi 0, %s130
      %s132 = sphi 0, %s130
      %s133 = sphi 0, %s132
      %s147 = sphi 0, %s133
      %s151 = sphi 0, %s151
      %s153 = sphi 0, %s151
      %s154 = sphi 0, %s153
      %s168 = sphi 0, %s154
      %s172 = sphi 0, %s172
      %s174 = sphi 0, %s172
      %s175 = sphi 0, %s174
      %s189 = sphi 0, %s175
      %s195 = sphi 0, %s197
      %s198 = sphi 0, %s195
      %s199 = sphi 0, %s198
      %s215 = sphi 0, %s199
      %s221 = sphi 0, %s223
      %s224 = sphi 0, %s221
      %s225 = sphi 0, %s224
      %s241 = sphi 0, %s225
    $region4: #{tpu_custom_call.1} parent=1 // loop_header_branch
      %31 = sbr.rel (%p29) target = $region8
    $region5: #{tpu_custom_call.1} parent=1 // loop_body
      %s33 = ssub.s32 %s28, 1
      %s34 = ssub.s32 %s28, 2
      %s35 = sadd.s32 %s28, 1
      %s36 = ssub.s32 %s28, %s35
      %p37 = scmp.eq.s32.totalorder %s36, 0
      %s39 = sadd.s32 %s38, 1
      %s40 = scalar_select %p37, %s38, %s39
      %p43 = pneg %p37
      %p44 = scmp.eq.s32.totalorder %s28, 1
      %p45 = por %p43, %p44
      %p46 = scmp.ne.s32.totalorder %s38, %s41
      %p47 = scmp.eq.s32.totalorder %s28, 0
      %p48 = por %p46, %p47
      %p49 = scmp.ne.s32.totalorder %s38, %s41
      %p50 = scmp.eq.s32.totalorder %s33, 1
      %p51 = por %p49, %p50
      %p52 = scmp.ne.s32.totalorder %s41, %s42
      %p53 = scmp.eq.s32.totalorder %s33, 0
      %p54 = por %p52, %p53
      %p55 = scmp.ne.s32.totalorder %s41, %s42
      %p56 = scmp.eq.s32.totalorder %s34, 1
      %p57 = por %p55, %p56
      %p59 = scmp.ne.s32.totalorder %s42, %s58
      %p60 = scmp.eq.s32.totalorder %s34, 0
      %p61 = por %p59, %p60
      %s62 = ssub.s32 %s28, %s35
      %p63 = scmp.eq.s32.totalorder %s62, 0
      %s65 = sadd.s32 %s64, 1
      %s66 = scalar_select %p63, %s64, %s65
      %p69 = pneg %p63
      %p70 = scmp.eq.s32.totalorder %s28, 1
      %p71 = por %p69, %p70
      %p72 = scmp.ne.s32.totalorder %s64, %s67
      %p73 = scmp.eq.s32.totalorder %s28, 0
      %p74 = por %p72, %p73
      %p75 = scmp.ne.s32.totalorder %s64, %s67
      %p76 = scmp.eq.s32.totalorder %s33, 1
      %p77 = por %p75, %p76
      %p78 = scmp.ne.s32.totalorder %s67, %s68
      %p79 = scmp.eq.s32.totalorder %s33, 0
      %p80 = por %p78, %p79
      %p81 = scmp.ne.s32.totalorder %s67, %s68
      %p82 = scmp.eq.s32.totalorder %s34, 1
      %p83 = por %p81, %p82
      %p85 = scmp.ne.s32.totalorder %s68, %s84
      %p86 = scmp.eq.s32.totalorder %s34, 0
      %p87 = por %p85, %p86
      %s89 = sadd.s32 %s88, 1
      %p92 = scmp.eq.s32.totalorder %s28, 1
      %p93 = scmp.ne.s32.totalorder %s88, %s90
      %p94 = scmp.eq.s32.totalorder %s28, 0
      %p95 = por %p93, %p94
      %p96 = scmp.ne.s32.totalorder %s88, %s90
      %p97 = scmp.eq.s32.totalorder %s33, 1
      %p98 = por %p96, %p97
      %p99 = scmp.ne.s32.totalorder %s90, %s91
      %p100 = scmp.eq.s32.totalorder %s33, 0
      %p101 = por %p99, %p100
      %p102 = scmp.ne.s32.totalorder %s90, %s91
      %p103 = scmp.eq.s32.totalorder %s34, 1
      %p104 = por %p102, %p103
      %p106 = scmp.ne.s32.totalorder %s91, %s105
      %p107 = scmp.eq.s32.totalorder %s34, 0
      %p108 = por %p106, %p107
      %s110 = sadd.s32 %s109, 1
      %p113 = scmp.eq.s32.totalorder %s28, 1
      %p114 = scmp.ne.s32.totalorder %s109, %s111
      %p115 = scmp.eq.s32.totalorder %s28, 0
      %p116 = por %p114, %p115
      %p117 = scmp.ne.s32.totalorder %s109, %s111
      %p118 = scmp.eq.s32.totalorder %s33, 1
      %p119 = por %p117, %p118
      %p120 = scmp.ne.s32.totalorder %s111, %s112
      %p121 = scmp.eq.s32.totalorder %s33, 0
      %p122 = por %p120, %p121
      %p123 = scmp.ne.s32.totalorder %s111, %s112
      %p124 = scmp.eq.s32.totalorder %s34, 1
      %p125 = por %p123, %p124
      %p127 = scmp.ne.s32.totalorder %s112, %s126
      %p128 = scmp.eq.s32.totalorder %s34, 0
      %p129 = por %p127, %p128
      %s131 = sadd.s32 %s130, 1
      %p134 = scmp.eq.s32.totalorder %s28, 1
      %p135 = scmp.ne.s32.totalorder %s130, %s132
      %p136 = scmp.eq.s32.totalorder %s28, 0
      %p137 = por %p135, %p136
      %p138 = scmp.ne.s32.totalorder %s130, %s132
      %p139 = scmp.eq.s32.totalorder %s33, 1
      %p140 = por %p138, %p139
      %p141 = scmp.ne.s32.totalorder %s132, %s133
      %p142 = scmp.eq.s32.totalorder %s33, 0
      %p143 = por %p141, %p142
      %p144 = scmp.ne.s32.totalorder %s132, %s133
      %p145 = scmp.eq.s32.totalorder %s34, 1
      %p146 = por %p144, %p145
      %p148 = scmp.ne.s32.totalorder %s133, %s147
      %p149 = scmp.eq.s32.totalorder %s34, 0
      %p150 = por %p148, %p149
      %s152 = sadd.s32 %s151, 1
      %p155 = scmp.eq.s32.totalorder %s28, 1
      %p156 = scmp.ne.s32.totalorder %s151, %s153
      %p157 = scmp.eq.s32.totalorder %s28, 0
      %p158 = por %p156, %p157
      %p159 = scmp.ne.s32.totalorder %s151, %s153
      %p160 = scmp.eq.s32.totalorder %s33, 1
      %p161 = por %p159, %p160
      %p162 = scmp.ne.s32.totalorder %s153, %s154
      %p163 = scmp.eq.s32.totalorder %s33, 0
      %p164 = por %p162, %p163
      %p165 = scmp.ne.s32.totalorder %s153, %s154
      %p166 = scmp.eq.s32.totalorder %s34, 1
      %p167 = por %p165, %p166
      %p169 = scmp.ne.s32.totalorder %s154, %s168
      %p170 = scmp.eq.s32.totalorder %s34, 0
      %p171 = por %p169, %p170
      %s173 = sadd.s32 %s172, 1
      %p176 = scmp.eq.s32.totalorder %s28, 1
      %p177 = scmp.ne.s32.totalorder %s172, %s174
      %p178 = scmp.eq.s32.totalorder %s28, 0
      %p179 = por %p177, %p178
      %p180 = scmp.ne.s32.totalorder %s172, %s174
      %p181 = scmp.eq.s32.totalorder %s33, 1
      %p182 = por %p180, %p181
      %p183 = scmp.ne.s32.totalorder %s174, %s175
      %p184 = scmp.eq.s32.totalorder %s33, 0
      %p185 = por %p183, %p184
      %p186 = scmp.ne.s32.totalorder %s174, %s175
      %p187 = scmp.eq.s32.totalorder %s34, 1
      %p188 = por %p186, %p187
      %p190 = scmp.ne.s32.totalorder %s175, %s189
      %p191 = scmp.eq.s32.totalorder %s34, 0
      %p192 = por %p190, %p191
      %s193 = ssub.s32 %s28, %s35
      %p194 = scmp.eq.s32.totalorder %s193, 0
      %s196 = sadd.s32 %s195, 1
      %s197 = scalar_select %p194, %s195, %s196
      %p200 = pneg %p194
      %p201 = scmp.eq.s32.totalorder %s28, 1
      %p202 = por %p200, %p201
      %p203 = scmp.ne.s32.totalorder %s195, %s198
      %p204 = scmp.eq.s32.totalorder %s28, 0
      %p205 = por %p203, %p204
      %p206 = scmp.ne.s32.totalorder %s195, %s198
      %p207 = scmp.eq.s32.totalorder %s33, 1
      %p208 = por %p206, %p207
      %p209 = scmp.ne.s32.totalorder %s198, %s199
      %p210 = scmp.eq.s32.totalorder %s33, 0
      %p211 = por %p209, %p210
      %p212 = scmp.ne.s32.totalorder %s198, %s199
      %p213 = scmp.eq.s32.totalorder %s34, 1
      %p214 = por %p212, %p213
      %p216 = scmp.ne.s32.totalorder %s199, %s215
      %p217 = scmp.eq.s32.totalorder %s34, 0
      %p218 = por %p216, %p217
      %s219 = ssub.s32 %s28, %s35
      %p220 = scmp.eq.s32.totalorder %s219, 0
      %s222 = sadd.s32 %s221, 1
      %s223 = scalar_select %p220, %s221, %s222
      %p226 = pneg %p220
      %p227 = scmp.eq.s32.totalorder %s28, 1
      %p228 = por %p226, %p227
      %p229 = scmp.ne.s32.totalorder %s221, %s224
      %p230 = scmp.eq.s32.totalorder %s28, 0
      %p231 = por %p229, %p230
      %p232 = scmp.ne.s32.totalorder %s221, %s224
      %p233 = scmp.eq.s32.totalorder %s33, 1
      %p234 = por %p232, %p233
      %p235 = scmp.ne.s32.totalorder %s224, %s225
      %p236 = scmp.eq.s32.totalorder %s33, 0
      %p237 = por %p235, %p236
      %p238 = scmp.ne.s32.totalorder %s224, %s225
      %p239 = scmp.eq.s32.totalorder %s34, 1
      %p240 = por %p238, %p239
      %p242 = scmp.ne.s32.totalorder %s225, %s241
      %p243 = scmp.eq.s32.totalorder %s34, 0
      %p244 = por %p242, %p243
      %p245 = scmp.le.s32.totalorder 1, %s28
      %p246 = scmp.lt.s32.totalorder %s28, 3
      %p247 = pnand %p245, %p246
      %p248 = pneg %p247
      // Predicated region
      $region9: #{tpu_custom_call.1} parent=5 // pred_check
        _
      $region10: #{tpu_custom_call.1} parent=5 // pred_check_branch
        %250 = sbr.rel (%p247) target = $region12
      $region11: #{tpu_custom_call.1} parent=5 // pred_region
        %s251 = ssub.s32 %s28, 1
        // Predicated region
        $region13: #{tpu_custom_call.1} parent=11 // pred_check
          %p252 = pneg %p101
        $region14: #{tpu_custom_call.1} parent=11 // pred_check_branch
          %254 = sbr.rel (%p252) target = $region16
        $region15: #{tpu_custom_call.1} parent=11 // pred_region
          %s256 = ssub.s32 2048, 2048
          %257 = vsyncadd [#allocation6], %s256
          %s258 = sshll.u32 [#allocation7], 4
          %s259 = int_to_ptr.vmem [resolvable:$true] %s258
          %264 = dma.hbm_to_vmem [thread:$0]  %s2, 2048, %s259, [#allocation6], 128, 128, 8
        $region16: #{tpu_custom_call.1} parent=11 // pred_fallthru
          _
        // Predicated region
        $region17: #{tpu_custom_call.1} parent=11 // pred_check
          %p265 = pneg %p122
        $region18: #{tpu_custom_call.1} parent=11 // pred_check_branch
          %267 = sbr.rel (%p265) target = $region20
        $region19: #{tpu_custom_call.1} parent=11 // pred_region
          %s269 = ssub.s32 2048, 2048
          %270 = vsyncadd [#allocation9], %s269
          %s271 = sshll.u32 [#allocation8], 4
          %s272 = int_to_ptr.vmem [resolvable:$true] %s271
          %277 = dma.hbm_to_vmem [thread:$0]  %s3, 2048, %s272, [#allocation9], 64, 64, 4
        $region20: #{tpu_custom_call.1} parent=11 // pred_fallthru
          _
        // Predicated region
        $region21: #{tpu_custom_call.1} parent=11 // pred_check
          %p278 = pneg %p143
        $region22: #{tpu_custom_call.1} parent=11 // pred_check_branch
          %280 = sbr.rel (%p278) target = $region24
        $region23: #{tpu_custom_call.1} parent=11 // pred_region
          _
        $region24: #{tpu_custom_call.1} parent=11 // pred_fallthru
          _
        // Predicated region
        $region25: #{tpu_custom_call.1} parent=11 // pred_check
          %p281 = pneg %p164
        $region26: #{tpu_custom_call.1} parent=11 // pred_check_branch
          %283 = sbr.rel (%p281) target = $region28
        $region27: #{tpu_custom_call.1} parent=11 // pred_region
          %s285 = ssub.s32 2048, 2048
          %286 = vsyncadd [#allocation9], %s285
          %s287 = sshll.u32 [#allocation10], 4
          %s288 = int_to_ptr.vmem [resolvable:$true] %s287
          %293 = dma.hbm_to_vmem [thread:$0]  %s5, 2048, %s288, [#allocation9], 128, 128, 8
        $region28: #{tpu_custom_call.1} parent=11 // pred_fallthru
          _
        // Predicated region
        $region29: #{tpu_custom_call.1} parent=11 // pred_check
          %p294 = pneg %p185
        $region30: #{tpu_custom_call.1} parent=11 // pred_check_branch
          %296 = sbr.rel (%p294) target = $region32
        $region31: #{tpu_custom_call.1} parent=11 // pred_region
          _
        $region32: #{tpu_custom_call.1} parent=11 // pred_fallthru
          _
      $region12: #{tpu_custom_call.1} parent=5 // pred_fallthru
        _
      %p297 = scmp.lt.s32.totalorder %s28, 2
      // Predicated region
      $region33: #{tpu_custom_call.1} parent=5 // pred_check
        %p298 = pneg %p297
      $region34: #{tpu_custom_call.1} parent=5 // pred_check_branch
        %300 = sbr.rel (%p298) target = $region36
      $region35: #{tpu_custom_call.1} parent=5 // pred_region
        // Predicated region
        $region37: #{tpu_custom_call.1} parent=35 // pred_check
          %p301 = pneg %p48
        $region38: #{tpu_custom_call.1} parent=35 // pred_check_branch
          %303 = sbr.rel (%p301) target = $region40
        $region39: #{tpu_custom_call.1} parent=35 // pred_region
          %s304 = sand.u32 %s38, 1
          %s305 = scalar_lea.sflag [#allocation3], %s304
          %s306 = sand.u32 %s38, 1
          %s307 = smul.addr %s306, 128
          %s308 = scalar_lea.vmem [#allocation2], %s307
          %s309 = smul.u32 16, %s28
          %s311 = ssub.s32 2048, 2048
          %312 = vsyncadd %s305, %s311
          %s313 = smul.addr %s309, 128
          %s314 = scalar_lea.hbm %s0, %s313
          %s315 = sshll.u32 %s308, 4
          %s316 = int_to_ptr.vmem [resolvable:$true] %s315
          %321 = dma.hbm_to_vmem [thread:$0]  %s314, 2048, %s316, %s305, 128, 128, 8
        $region40: #{tpu_custom_call.1} parent=35 // pred_fallthru
          _
        // Predicated region
        $region41: #{tpu_custom_call.1} parent=35 // pred_check
          %p322 = pneg %p74
        $region42: #{tpu_custom_call.1} parent=35 // pred_check_branch
          %324 = sbr.rel (%p322) target = $region44
        $region43: #{tpu_custom_call.1} parent=35 // pred_region
          #allocation15 [shape = 'u32[6]{0}', space=smem, size = 0x18, scoped, tag = 'DMA stride descriptor']
          %s325 = sand.u32 %s28, 1
          %s326 = scalar_lea.sflag [#allocation6], %s325
          %s327 = sand.u32 %s64, 1
          %s328 = smul.addr %s327, 384
          %s329 = scalar_lea.vmem [#allocation5], %s328
          %s330 = smul.u32 16, %s28
          %s332 = ssub.s32 6144, 6144
          %333 = vsyncadd %s326, %s332
          %s334 = smul.addr %s330, 128
          %s335 = scalar_lea.hbm %s1, %s334
          %s337 = sshll.u32 1, 14
          %s338 = sxor.u32 4294967295, %s337
          %s340 = sld [smem:[#allocation0]]
          %s341 = sadd.s32 2, %s340
          %s343 = sshll.u32 7, 26
          %s344 = sxor.u32 4294967295, %s343
          %s345 = sand.u32 0, %s344
          %s346 = sshll.u32 %s341, 26
          %s347 = sor.u32 %s345, %s346
          %s348 = sshll.u32 %s329, 4
          %s349 = int_to_ptr.vmem [resolvable:$true] %s348
          %355 = sst [smem:[#allocation15]] 4096
          %s356 = scalar_lea.smem [#allocation15], 1
          %357 = sst [smem:[%s356]] 2048
          %s358 = scalar_lea.smem [#allocation15], 2
          %359 = sst [smem:[%s358]] 16
          %s360 = scalar_lea.smem [#allocation15], 3
          %361 = sst [smem:[%s360]] 128
          %s362 = scalar_lea.smem [#allocation15], 4
          %363 = sst [smem:[%s362]] 128
          %s364 = scalar_lea.smem [#allocation15], 5
          %365 = sst [smem:[%s364]] 8
          %367 = dma.general %s335, 6144, %s349, %s326, [#allocation14], [#allocation15], %s347, 0
        $region44: #{tpu_custom_call.1} parent=35 // pred_fallthru
          _
      $region36: #{tpu_custom_call.1} parent=5 // pred_fallthru
        _
      %p368 = scmp.le.s32.totalorder 1, %s28
      %p369 = scmp.lt.s32.totalorder %s28, 3
      %p370 = pnand %p368, %p369
      %p371 = pneg %p370
      // Predicated region
      $region45: #{tpu_custom_call.1} parent=5 // pred_check
        _
      $region46: #{tpu_custom_call.1} parent=5 // pred_check_branch
        %373 = sbr.rel (%p370) target = $region48
      $region47: #{tpu_custom_call.1} parent=5 // pred_region
        %s374 = ssub.s32 %s28, 1
        %s375 = sand.u32 %s41, 1
        %s376 = scalar_lea.sflag [#allocation3], %s375
        %s377 = sand.u32 %s41, 1
        %s378 = smul.addr %s377, 128
        %s379 = scalar_lea.vmem [#allocation2], %s378
        // Predicated region
        $region49: #{tpu_custom_call.1} parent=47 // pred_check
          %p380 = pneg %p54
        $region50: #{tpu_custom_call.1} parent=47 // pred_check_branch
          %382 = sbr.rel (%p380) target = $region52
        $region51: #{tpu_custom_call.1} parent=47 // pred_region
          %383 = dma.done %s376, 2048
        $region52: #{tpu_custom_call.1} parent=47 // pred_fallthru
          _
        %s384 = sand.u32 %s33, 1
        %s385 = scalar_lea.sflag [#allocation6], %s384
        %s386 = sand.u32 %s67, 1
        %s387 = smul.addr %s386, 384
        %s388 = scalar_lea.vmem [#allocation5], %s387
        // Predicated region
        $region53: #{tpu_custom_call.1} parent=47 // pred_check
          %p389 = pneg %p80
        $region54: #{tpu_custom_call.1} parent=47 // pred_check_branch
          %391 = sbr.rel (%p389) target = $region56
        $region55: #{tpu_custom_call.1} parent=47 // pred_region
          %392 = dma.done %s385, 6144
        $region56: #{tpu_custom_call.1} parent=47 // pred_fallthru
          _
        // Predicated region
        $region57: #{tpu_custom_call.1} parent=47 // pred_check
          %p393 = pneg %p101
        $region58: #{tpu_custom_call.1} parent=47 // pred_check_branch
          %395 = sbr.rel (%p393) target = $region60
        $region59: #{tpu_custom_call.1} parent=47 // pred_region
          %396 = dma.done [#allocation6], 2048
        $region60: #{tpu_custom_call.1} parent=47 // pred_fallthru
          _
        // Predicated region
        $region61: #{tpu_custom_call.1} parent=47 // pred_check
          %p397 = pneg %p122
        $region62: #{tpu_custom_call.1} parent=47 // pred_check_branch
          %399 = sbr.rel (%p397) target = $region64
        $region63: #{tpu_custom_call.1} parent=47 // pred_region
          %400 = dma.done [#allocation9], 2048
        $region64: #{tpu_custom_call.1} parent=47 // pred_fallthru
          _
        // Predicated region
        $region65: #{tpu_custom_call.1} parent=47 // pred_check
          %p401 = pneg %p164
        $region66: #{tpu_custom_call.1} parent=47 // pred_check_branch
          %403 = sbr.rel (%p401) target = $region68
        $region67: #{tpu_custom_call.1} parent=47 // pred_region
          %404 = dma.done [#allocation9], 2048
        $region68: #{tpu_custom_call.1} parent=47 // pred_fallthru
          _
        %s405 = sand.u32 %s41, 1
        %s406 = scalar_lea.sflag [#allocation3], %s405
        %s407 = sand.u32 %s41, 1
        %s408 = smul.addr %s407, 128
        %s409 = scalar_lea.vmem [#allocation2], %s408
        %p410 = pneg %p54
        %p411 = pneg %p51
        %s412 = sand.u32 %s33, 1
        %s413 = scalar_lea.sflag [#allocation6], %s412
        %s414 = sand.u32 %s67, 1
        %s415 = smul.addr %s414, 384
        %s416 = scalar_lea.vmem [#allocation5], %s415
        %p417 = pneg %p80
        %p418 = pneg %p77
        %p419 = pneg %p101
        %p420 = pneg %p98
        %p421 = pneg %p122
        %p422 = pneg %p119
        %p423 = pneg %p143
        %p424 = pneg %p140
        %p425 = pneg %p164
        %p426 = pneg %p161
        %p427 = pneg %p185
        %p428 = pneg %p182
        %p429 = pneg %p211
        %p430 = pneg %p208
        %s431 = sand.u32 %s198, 1
        %s432 = scalar_lea.sflag [#allocation4], %s431
        %s433 = sand.u32 %s198, 1
        %s434 = smul.addr %s433, 128
        %s435 = scalar_lea.vmem [#allocation11], %s434
        %p436 = pneg %p237
        %p437 = pneg %p234
        %s438 = sand.u32 %s224, 1
        %s439 = scalar_lea.sflag [#allocation13], %s438
        %s440 = sand.u32 %s224, 1
        %s441 = smul.addr %s440, 384
        %s442 = scalar_lea.vmem [#allocation12], %s441
        %s443 = smul.u32 16, %s33
        %s444 = smul.u32 16, %s33
        %s445 = smul.u32 16, %s33
        %s446 = smul.u32 16, %s33
        %v448 = vld [vmem:[%s388] sm:$0xff]
        %v449 = vld [vmem:[%s388 + $0x8] sm:$0xff]
        %v450 = vld [vmem:[%s388 + $0x10] sm:$0xff]
        %v451 = vld [vmem:[%s388 + $0x18] sm:$0xff]
        %v452 = vld [vmem:[%s388 + $0x20] sm:$0xff]
        %v453 = vld [vmem:[%s388 + $0x28] sm:$0xff]
        %v454 = vld [vmem:[%s388 + $0x30] sm:$0xff]
        %v455 = vld [vmem:[%s388 + $0x38] sm:$0xff]
        %v456 = vld [vmem:[%s388 + $0x40] sm:$0xff]
        %v457 = vld [vmem:[%s388 + $0x48] sm:$0xff]
        %v458 = vld [vmem:[%s388 + $0x50] sm:$0xff]
        %v459 = vld [vmem:[%s388 + $0x58] sm:$0xff]
        %v460 = vld [vmem:[%s388 + $0x60] sm:$0xff]
        %v461 = vld [vmem:[%s388 + $0x68] sm:$0xff]
        %v462 = vld [vmem:[%s388 + $0x70] sm:$0xff]
        %v463 = vld [vmem:[%s388 + $0x78] sm:$0xff]
        %v464 = vld [vmem:[%s388 + $0x80] sm:$0xff]
        %v465 = vld [vmem:[%s388 + $0x88] sm:$0xff]
        %v466 = vld [vmem:[%s388 + $0x90] sm:$0xff]
        %v467 = vld [vmem:[%s388 + $0x98] sm:$0xff]
        %v468 = vld [vmem:[%s388 + $0xa0] sm:$0xff]
        %v469 = vld [vmem:[%s388 + $0xa8] sm:$0xff]
        %v470 = vld [vmem:[%s388 + $0xb0] sm:$0xff]
        %v471 = vld [vmem:[%s388 + $0xb8] sm:$0xff]
        %v472 = vld [vmem:[%s388 + $0xc0] sm:$0xff]
        %v473 = vld [vmem:[%s388 + $0xc8] sm:$0xff]
        %v474 = vld [vmem:[%s388 + $0xd0] sm:$0xff]
        %v475 = vld [vmem:[%s388 + $0xd8] sm:$0xff]
        %v476 = vld [vmem:[%s388 + $0xe0] sm:$0xff]
        %v477 = vld [vmem:[%s388 + $0xe8] sm:$0xff]
        %v478 = vld [vmem:[%s388 + $0xf0] sm:$0xff]
        %v479 = vld [vmem:[%s388 + $0xf8] sm:$0xff]
        %v480 = vld [vmem:[%s388 + $0x100] sm:$0xff]
        %v481 = vld [vmem:[%s388 + $0x108] sm:$0xff]
        %v482 = vld [vmem:[%s388 + $0x110] sm:$0xff]
        %v483 = vld [vmem:[%s388 + $0x118] sm:$0xff]
        %v484 = vld [vmem:[%s388 + $0x120] sm:$0xff]
        %v485 = vld [vmem:[%s388 + $0x128] sm:$0xff]
        %v486 = vld [vmem:[%s388 + $0x130] sm:$0xff]
        %v487 = vld [vmem:[%s388 + $0x138] sm:$0xff]
        %v488 = vld [vmem:[%s388 + $0x140] sm:$0xff]
        %v489 = vld [vmem:[%s388 + $0x148] sm:$0xff]
        %v490 = vld [vmem:[%s388 + $0x150] sm:$0xff]
        %v491 = vld [vmem:[%s388 + $0x158] sm:$0xff]
        %v492 = vld [vmem:[%s388 + $0x160] sm:$0xff]
        %v493 = vld [vmem:[%s388 + $0x168] sm:$0xff]
        %v494 = vld [vmem:[%s388 + $0x170] sm:$0xff]
        %v495 = vld [vmem:[%s388 + $0x178] sm:$0xff]
        %v496 = vpack.c.bf16 %v449, %v448
        %v497 = vpack.c.bf16 %v451, %v450
        %v498 = vpack.c.bf16 %v453, %v452
        %v499 = vpack.c.bf16 %v455, %v454
        %v500 = vpack.c.bf16 %v457, %v456
        %v501 = vpack.c.bf16 %v459, %v458
        %v502 = vpack.c.bf16 %v461, %v460
        %v503 = vpack.c.bf16 %v463, %v462
        %v504 = vpack.c.bf16 %v465, %v464
        %v505 = vpack.c.bf16 %v467, %v466
        %v506 = vpack.c.bf16 %v469, %v468
        %v507 = vpack.c.bf16 %v471, %v470
        %v508 = vpack.c.bf16 %v473, %v472
        %v509 = vpack.c.bf16 %v475, %v474
        %v510 = vpack.c.bf16 %v477, %v476
        %v511 = vpack.c.bf16 %v479, %v478
        %v512 = vpack.c.bf16 %v481, %v480
        %v513 = vpack.c.bf16 %v483, %v482
        %v514 = vpack.c.bf16 %v485, %v484
        %v515 = vpack.c.bf16 %v487, %v486
        %v516 = vpack.c.bf16 %v489, %v488
        %v517 = vpack.c.bf16 %v491, %v490
        %v518 = vpack.c.bf16 %v493, %v492
        %v519 = vpack.c.bf16 %v495, %v494
        %v520 = vld [vmem:[%s379] sm:$0xff]
        %v521 = vld [vmem:[%s379 + $0x8] sm:$0xff]
        %v522 = vld [vmem:[%s379 + $0x10] sm:$0xff]
        %v523 = vld [vmem:[%s379 + $0x18] sm:$0xff]
        %v524 = vld [vmem:[%s379 + $0x20] sm:$0xff]
        %v525 = vld [vmem:[%s379 + $0x28] sm:$0xff]
        %v526 = vld [vmem:[%s379 + $0x30] sm:$0xff]
        %v527 = vld [vmem:[%s379 + $0x38] sm:$0xff]
        %v528 = vld [vmem:[%s379 + $0x40] sm:$0xff]
        %v529 = vld [vmem:[%s379 + $0x48] sm:$0xff]
        %v530 = vld [vmem:[%s379 + $0x50] sm:$0xff]
        %v531 = vld [vmem:[%s379 + $0x58] sm:$0xff]
        %v532 = vld [vmem:[%s379 + $0x60] sm:$0xff]
        %v533 = vld [vmem:[%s379 + $0x68] sm:$0xff]
        %v534 = vld [vmem:[%s379 + $0x70] sm:$0xff]
        %v535 = vld [vmem:[%s379 + $0x78] sm:$0xff]
        %v536 = vpack.c.bf16 %v521, %v520
        %v537 = vpack.c.bf16 %v523, %v522
        %v538 = vpack.c.bf16 %v525, %v524
        %v539 = vpack.c.bf16 %v527, %v526
        %v540 = vpack.c.bf16 %v529, %v528
        %v541 = vpack.c.bf16 %v531, %v530
        %v542 = vpack.c.bf16 %v533, %v532
        %v543 = vpack.c.bf16 %v535, %v534
        %v544 = vld [vmem:[#allocation7] sm:$0xff]
        %v545 = vld [vmem:[#allocation7 + $0x8] sm:$0xff]
        %v546 = vld [vmem:[#allocation7 + $0x10] sm:$0xff]
        %v547 = vld [vmem:[#allocation7 + $0x18] sm:$0xff]
        %v548 = vld [vmem:[#allocation7 + $0x20] sm:$0xff]
        %v549 = vld [vmem:[#allocation7 + $0x28] sm:$0xff]
        %v550 = vld [vmem:[#allocation7 + $0x30] sm:$0xff]
        %v551 = vld [vmem:[#allocation7 + $0x38] sm:$0xff]
        %v552 = vld [vmem:[#allocation7 + $0x40] sm:$0xff]
        %v553 = vld [vmem:[#allocation7 + $0x48] sm:$0xff]
        %v554 = vld [vmem:[#allocation7 + $0x50] sm:$0xff]
        %v555 = vld [vmem:[#allocation7 + $0x58] sm:$0xff]
        %v556 = vld [vmem:[#allocation7 + $0x60] sm:$0xff]
        %v557 = vld [vmem:[#allocation7 + $0x68] sm:$0xff]
        %v558 = vld [vmem:[#allocation7 + $0x70] sm:$0xff]
        %v559 = vld [vmem:[#allocation7 + $0x78] sm:$0xff]
        %v576 = vunpack.c.l.b16 %v544
        %v577 = vunpack.c.h.b16 %v544
        %v578 = vunpack.c.l.b16 %v545
        %v579 = vunpack.c.h.b16 %v545
        %v580 = vunpack.c.l.b16 %v546
        %v581 = vunpack.c.h.b16 %v546
        %v582 = vunpack.c.l.b16 %v547
        %v583 = vunpack.c.h.b16 %v547
        %v584 = vunpack.c.l.b16 %v548
        %v585 = vunpack.c.h.b16 %v548
        %v586 = vunpack.c.l.b16 %v549
        %v587 = vunpack.c.h.b16 %v549
        %v588 = vunpack.c.l.b16 %v550
        %v589 = vunpack.c.h.b16 %v550
        %v590 = vunpack.c.l.b16 %v551
        %v591 = vunpack.c.h.b16 %v551
        %v592 = vunpack.c.l.b16 %v552
        %v593 = vunpack.c.h.b16 %v552
        %v594 = vunpack.c.l.b16 %v553
        %v595 = vunpack.c.h.b16 %v553
        %v596 = vunpack.c.l.b16 %v554
        %v597 = vunpack.c.h.b16 %v554
        %v598 = vunpack.c.l.b16 %v555
        %v599 = vunpack.c.h.b16 %v555
        %v600 = vunpack.c.l.b16 %v556
        %v601 = vunpack.c.h.b16 %v556
        %v602 = vunpack.c.l.b16 %v557
        %v603 = vunpack.c.h.b16 %v557
        %v604 = vunpack.c.l.b16 %v558
        %v605 = vunpack.c.h.b16 %v558
        %v606 = vunpack.c.l.b16 %v559
        %v607 = vunpack.c.h.b16 %v559
        %v608 = vpack.c.b16 %v578, %v576
        %v609 = vpack.c.b16 %v579, %v577
        %v610 = vpack.c.b16 %v582, %v580
        %v611 = vpack.c.b16 %v583, %v581
        %v612 = vpack.c.b16 %v586, %v584
        %v613 = vpack.c.b16 %v587, %v585
        %v614 = vpack.c.b16 %v590, %v588
        %v615 = vpack.c.b16 %v591, %v589
        %v616 = vpack.c.b16 %v594, %v592
        %v617 = vpack.c.b16 %v595, %v593
        %v618 = vpack.c.b16 %v598, %v596
        %v619 = vpack.c.b16 %v599, %v597
        %v620 = vpack.c.b16 %v602, %v600
        %v621 = vpack.c.b16 %v603, %v601
        %v622 = vpack.c.b16 %v606, %v604
        %v623 = vpack.c.b16 %v607, %v605
        %640 = vmatprep.subr.bf16.mxu0 %v609
        %641 = vmatpush1.bf16.msra.mxu0 %v608
        %642 = vmatprep.subr.bf16.mxu0 %v611
        %643 = vmatpush1.bf16.msra.mxu0 %v610
        %644 = vmatprep.subr.bf16.mxu0 %v613
        %645 = vmatpush1.bf16.msra.mxu0 %v612
        %646 = vmatprep.subr.bf16.mxu0 %v615
        %647 = vmatpush1.bf16.msra.mxu0 %v614
        %648 = vmatprep.subr.bf16.mxu0 %v617
        %649 = vmatpush1.bf16.msra.mxu0 %v616
        %650 = vmatprep.subr.bf16.mxu0 %v619
        %651 = vmatpush1.bf16.msra.mxu0 %v618
        %652 = vmatprep.subr.bf16.mxu0 %v621
        %653 = vmatpush1.bf16.msra.mxu0 %v620
        %654 = vmatprep.subr.bf16.mxu0 %v623
        %655 = vmatpush1.bf16.msra.mxu0 %v622
        %656 = vmatprep.subr.bf16.mxu0 0
        %657 = vmatpush1.bf16.msra.mxu0 0
        %658 = vmatprep.subr.bf16.mxu0 0
        %659 = vmatpush1.bf16.msra.mxu0 0
        %660 = vmatprep.subr.bf16.mxu0 0
        %661 = vmatpush1.bf16.msra.mxu0 0
        %662 = vmatprep.subr.bf16.mxu0 0
        %663 = vmatpush1.bf16.msra.mxu0 0
        %664 = vmatprep.subr.bf16.mxu0 0
        %665 = vmatpush1.bf16.msra.mxu0 0
        %666 = vmatprep.subr.bf16.mxu0 0
        %667 = vmatpush1.bf16.msra.mxu0 0
        %668 = vmatprep.subr.bf16.mxu0 0
        %669 = vmatpush1.bf16.msra.mxu0 0
        %670 = vmatprep.subr.bf16.mxu0 0
        %671 = vmatpush1.bf16.msra.mxu0 0
        %672 = vmatprep.mubr.bf16.mxu0 0
        %673 = vmatmul.mubr.bf16.gmra.mrb[0].mxu0 %v496
        %v674 = vpop.f32.mrb[0].mxu0
        %v675 = vadd.f32 0.0, %v674
        %v676 = vpop.f32.mrb[0].mxu0
        %v677 = vadd.f32 0.0, %v676
        %v678 = vpop.f32.mrb[0].mxu0
        %v679 = vadd.f32 0.0, %v678
        %v680 = vpop.f32.mrb[0].mxu0
        %v681 = vadd.f32 0.0, %v680
        %682 = vmatprep.mubr.bf16.mxu0 0
        %683 = vmatmul.mubr.bf16.gmra.mrb[0].mxu0 %v497
        %v684 = vpop.f32.mrb[0].mxu0
        %v685 = vadd.f32 0.0, %v684
        %v686 = vpop.f32.mrb[0].mxu0
        %v687 = vadd.f32 0.0, %v686
        %v688 = vpop.f32.mrb[0].mxu0
        %v689 = vadd.f32 0.0, %v688
        %v690 = vpop.f32.mrb[0].mxu0
        %v691 = vadd.f32 0.0, %v690
        %692 = vmatprep.mubr.bf16.mxu0 0
        %693 = vmatmul.mubr.bf16.gmra.mrb[0].mxu0 %v498
        %v694 = vpop.f32.mrb[0].mxu0
        %v695 = vadd.f32 0.0, %v694
        %v696 = vpop.f32.mrb[0].mxu0
        %v697 = vadd.f32 0.0, %v696
        %v698 = vpop.f32.mrb[0].mxu0
        %v699 = vadd.f32 0.0, %v698
        %v700 = vpop.f32.mrb[0].mxu0
        %v701 = vadd.f32 0.0, %v700
        %702 = vmatprep.mubr.bf16.mxu0 0
        %703 = vmatmul.mubr.bf16.gmra.mrb[0].mxu0 %v499
        %v704 = vpop.f32.mrb[0].mxu0
        %v705 = vadd.f32 0.0, %v704
        %v706 = vpop.f32.mrb[0].mxu0
        %v707 = vadd.f32 0.0, %v706
        %v708 = vpop.f32.mrb[0].mxu0
        %v709 = vadd.f32 0.0, %v708
        %v710 = vpop.f32.mrb[0].mxu0
        %v711 = vadd.f32 0.0, %v710
        %712 = vmatprep.mubr.bf16.mxu0 0
        %713 = vmatmul.mubr.bf16.gmra.mrb[0].mxu0 %v500
        %v714 = vpop.f32.mrb[0].mxu0
        %v715 = vadd.f32 0.0, %v714
        %v716 = vpop.f32.mrb[0].mxu0
        %v717 = vadd.f32 0.0, %v716
        %v718 = vpop.f32.mrb[0].mxu0
        %v719 = vadd.f32 0.0, %v718
        %v720 = vpop.f32.mrb[0].mxu0
        %v721 = vadd.f32 0.0, %v720
        %722 = vmatprep.mubr.bf16.mxu0 0
        %723 = vmatmul.mubr.bf16.gmra.mrb[0].mxu0 %v501
        %v724 = vpop.f32.mrb[0].mxu0
        %v725 = vadd.f32 0.0, %v724
        %v726 = vpop.f32.mrb[0].mxu0
        %v727 = vadd.f32 0.0, %v726
        %v728 = vpop.f32.mrb[0].mxu0
        %v729 = vadd.f32 0.0, %v728
        %v730 = vpop.f32.mrb[0].mxu0
        %v731 = vadd.f32 0.0, %v730
        %732 = vmatprep.mubr.bf16.mxu0 0
        %733 = vmatmul.mubr.bf16.gmra.mrb[0].mxu0 %v502
        %v734 = vpop.f32.mrb[0].mxu0
        %v735 = vadd.f32 0.0, %v734
        %v736 = vpop.f32.mrb[0].mxu0
        %v737 = vadd.f32 0.0, %v736
        %v738 = vpop.f32.mrb[0].mxu0
        %v739 = vadd.f32 0.0, %v738
        %v740 = vpop.f32.mrb[0].mxu0
        %v741 = vadd.f32 0.0, %v740
        %742 = vmatprep.mubr.bf16.mxu0 0
        %743 = vmatmul.mubr.bf16.gmra.mrb[0].mxu0 %v503
        %v744 = vpop.f32.mrb[0].mxu0
        %v745 = vadd.f32 0.0, %v744
        %v746 = vpop.f32.mrb[0].mxu0
        %v747 = vadd.f32 0.0, %v746
        %v748 = vpop.f32.mrb[0].mxu0
        %v749 = vadd.f32 0.0, %v748
        %v750 = vpop.f32.mrb[0].mxu0
        %v751 = vadd.f32 0.0, %v750
        %752 = vmatprep.mubr.bf16.mxu0 0
        %753 = vmatmul.mubr.bf16.gmra.mrb[0].mxu0 %v504
        %v754 = vpop.f32.mrb[0].mxu0
        %v755 = vadd.f32 0.0, %v754
        %v756 = vpop.f32.mrb[0].mxu0
        %v757 = vadd.f32 0.0, %v756
        %v758 = vpop.f32.mrb[0].mxu0
        %v759 = vadd.f32 0.0, %v758
        %v760 = vpop.f32.mrb[0].mxu0
        %v761 = vadd.f32 0.0, %v760
        %762 = vmatprep.mubr.bf16.mxu0 0
        %763 = vmatmul.mubr.bf16.gmra.mrb[0].mxu0 %v505
        %v764 = vpop.f32.mrb[0].mxu0
        %v765 = vadd.f32 0.0, %v764
        %v766 = vpop.f32.mrb[0].mxu0
        %v767 = vadd.f32 0.0, %v766
        %v768 = vpop.f32.mrb[0].mxu0
        %v769 = vadd.f32 0.0, %v768
        %v770 = vpop.f32.mrb[0].mxu0
        %v771 = vadd.f32 0.0, %v770
        %772 = vmatprep.mubr.bf16.mxu0 0
        %773 = vmatmul.mubr.bf16.gmra.mrb[0].mxu0 %v506
        %v774 = vpop.f32.mrb[0].mxu0
        %v775 = vadd.f32 0.0, %v774
        %v776 = vpop.f32.mrb[0].mxu0
        %v777 = vadd.f32 0.0, %v776
        %v778 = vpop.f32.mrb[0].mxu0
        %v779 = vadd.f32 0.0, %v778
        %v780 = vpop.f32.mrb[0].mxu0
        %v781 = vadd.f32 0.0, %v780
        %782 = vmatprep.mubr.bf16.mxu0 0
        %783 = vmatmul.mubr.bf16.gmra.mrb[0].mxu0 %v507
        %v784 = vpop.f32.mrb[0].mxu0
        %v785 = vadd.f32 0.0, %v784
        %v786 = vpop.f32.mrb[0].mxu0
        %v787 = vadd.f32 0.0, %v786
        %v788 = vpop.f32.mrb[0].mxu0
        %v789 = vadd.f32 0.0, %v788
        %v790 = vpop.f32.mrb[0].mxu0
        %v791 = vadd.f32 0.0, %v790
        %792 = vmatprep.mubr.bf16.mxu0 0
        %793 = vmatmul.mubr.bf16.gmra.mrb[0].mxu0 %v508
        %v794 = vpop.f32.mrb[0].mxu0
        %v795 = vadd.f32 0.0, %v794
        %v796 = vpop.f32.mrb[0].mxu0
        %v797 = vadd.f32 0.0, %v796
        %v798 = vpop.f32.mrb[0].mxu0
        %v799 = vadd.f32 0.0, %v798
        %v800 = vpop.f32.mrb[0].mxu0
        %v801 = vadd.f32 0.0, %v800
        %802 = vmatprep.mubr.bf16.mxu0 0
        %803 = vmatmul.mubr.bf16.gmra.mrb[0].mxu0 %v509
        %v804 = vpop.f32.mrb[0].mxu0
        %v805 = vadd.f32 0.0, %v804
        %v806 = vpop.f32.mrb[0].mxu0
        %v807 = vadd.f32 0.0, %v806
        %v808 = vpop.f32.mrb[0].mxu0
        %v809 = vadd.f32 0.0, %v808
        %v810 = vpop.f32.mrb[0].mxu0
        %v811 = vadd.f32 0.0, %v810
        %812 = vmatprep.mubr.bf16.mxu0 0
        %813 = vmatmul.mubr.bf16.gmra.mrb[0].mxu0 %v510
        %v814 = vpop.f32.mrb[0].mxu0
        %v815 = vadd.f32 0.0, %v814
        %v816 = vpop.f32.mrb[0].mxu0
        %v817 = vadd.f32 0.0, %v816
        %v818 = vpop.f32.mrb[0].mxu0
        %v819 = vadd.f32 0.0, %v818
        %v820 = vpop.f32.mrb[0].mxu0
        %v821 = vadd.f32 0.0, %v820
        %822 = vmatprep.mubr.bf16.mxu0 0
        %823 = vmatmul.mubr.bf16.gmra.mrb[0].mxu0 %v511
        %v824 = vpop.f32.mrb[0].mxu0
        %v825 = vadd.f32 0.0, %v824
        %v826 = vpop.f32.mrb[0].mxu0
        %v827 = vadd.f32 0.0, %v826
        %v828 = vpop.f32.mrb[0].mxu0
        %v829 = vadd.f32 0.0, %v828
        %v830 = vpop.f32.mrb[0].mxu0
        %v831 = vadd.f32 0.0, %v830
        %832 = vmatprep.mubr.bf16.mxu0 0
        %833 = vmatmul.mubr.bf16.gmra.mrb[0].mxu0 %v512
        %v834 = vpop.f32.mrb[0].mxu0
        %v835 = vadd.f32 0.0, %v834
        %v836 = vpop.f32.mrb[0].mxu0
        %v837 = vadd.f32 0.0, %v836
        %v838 = vpop.f32.mrb[0].mxu0
        %v839 = vadd.f32 0.0, %v838
        %v840 = vpop.f32.mrb[0].mxu0
        %v841 = vadd.f32 0.0, %v840
        %842 = vmatprep.mubr.bf16.mxu0 0
        %843 = vmatmul.mubr.bf16.gmra.mrb[0].mxu0 %v513
        %v844 = vpop.f32.mrb[0].mxu0
        %v845 = vadd.f32 0.0, %v844
        %v846 = vpop.f32.mrb[0].mxu0
        %v847 = vadd.f32 0.0, %v846
        %v848 = vpop.f32.mrb[0].mxu0
        %v849 = vadd.f32 0.0, %v848
        %v850 = vpop.f32.mrb[0].mxu0
        %v851 = vadd.f32 0.0, %v850
        %852 = vmatprep.mubr.bf16.mxu0 0
        %853 = vmatmul.mubr.bf16.gmra.mrb[0].mxu0 %v514
        %v854 = vpop.f32.mrb[0].mxu0
        %v855 = vadd.f32 0.0, %v854
        %v856 = vpop.f32.mrb[0].mxu0
        %v857 = vadd.f32 0.0, %v856
        %v858 = vpop.f32.mrb[0].mxu0
        %v859 = vadd.f32 0.0, %v858
        %v860 = vpop.f32.mrb[0].mxu0
        %v861 = vadd.f32 0.0, %v860
        %862 = vmatprep.mubr.bf16.mxu0 0
        %863 = vmatmul.mubr.bf16.gmra.mrb[0].mxu0 %v515
        %v864 = vpop.f32.mrb[0].mxu0
        %v865 = vadd.f32 0.0, %v864
        %v866 = vpop.f32.mrb[0].mxu0
        %v867 = vadd.f32 0.0, %v866
        %v868 = vpop.f32.mrb[0].mxu0
        %v869 = vadd.f32 0.0, %v868
        %v870 = vpop.f32.mrb[0].mxu0
        %v871 = vadd.f32 0.0, %v870
        %872 = vmatprep.mubr.bf16.mxu0 0
        %873 = vmatmul.mubr.bf16.gmra.mrb[0].mxu0 %v516
        %v874 = vpop.f32.mrb[0].mxu0
        %v875 = vadd.f32 0.0, %v874
        %v876 = vpop.f32.mrb[0].mxu0
        %v877 = vadd.f32 0.0, %v876
        %v878 = vpop.f32.mrb[0].mxu0
        %v879 = vadd.f32 0.0, %v878
        %v880 = vpop.f32.mrb[0].mxu0
        %v881 = vadd.f32 0.0, %v880
        %882 = vmatprep.mubr.bf16.mxu0 0
        %883 = vmatmul.mubr.bf16.gmra.mrb[0].mxu0 %v517
        %v884 = vpop.f32.mrb[0].mxu0
        %v885 = vadd.f32 0.0, %v884
        %v886 = vpop.f32.mrb[0].mxu0
        %v887 = vadd.f32 0.0, %v886
        %v888 = vpop.f32.mrb[0].mxu0
        %v889 = vadd.f32 0.0, %v888
        %v890 = vpop.f32.mrb[0].mxu0
        %v891 = vadd.f32 0.0, %v890
        %892 = vmatprep.mubr.bf16.mxu0 0
        %893 = vmatmul.mubr.bf16.gmra.mrb[0].mxu0 %v518
        %v894 = vpop.f32.mrb[0].mxu0
        %v895 = vadd.f32 0.0, %v894
        %v896 = vpop.f32.mrb[0].mxu0
        %v897 = vadd.f32 0.0, %v896
        %v898 = vpop.f32.mrb[0].mxu0
        %v899 = vadd.f32 0.0, %v898
        %v900 = vpop.f32.mrb[0].mxu0
        %v901 = vadd.f32 0.0, %v900
        %902 = vmatprep.mubr.bf16.mxu0 0
        %903 = vmatmul.mubr.bf16.gmra.mrb[0].mxu0 %v519
        %v904 = vpop.f32.mrb[0].mxu0
        %v905 = vadd.f32 0.0, %v904
        %v906 = vpop.f32.mrb[0].mxu0
        %v907 = vadd.f32 0.0, %v906
        %v908 = vpop.f32.mrb[0].mxu0
        %v909 = vadd.f32 0.0, %v908
        %v910 = vpop.f32.mrb[0].mxu0
        %v911 = vadd.f32 0.0, %v910
        %912 = vdwg.mxu0
        %v913 = vmul.f32 %v675, %v675
        %v914 = vmul.f32 %v679, %v679
        %v915 = vmul.f32 %v685, %v685
        %v916 = vmul.f32 %v689, %v689
        %v917 = vmul.f32 %v695, %v695
        %v918 = vmul.f32 %v699, %v699
        %v919 = vmul.f32 %v705, %v705
        %v920 = vmul.f32 %v709, %v709
        %v921 = vmul.f32 %v715, %v715
        %v922 = vmul.f32 %v719, %v719
        %v923 = vmul.f32 %v725, %v725
        %v924 = vmul.f32 %v729, %v729
        %v925 = vmul.f32 %v735, %v735
        %v926 = vmul.f32 %v739, %v739
        %v927 = vmul.f32 %v745, %v745
        %v928 = vmul.f32 %v749, %v749
        %v929 = vmul.f32 %v755, %v755
        %v930 = vmul.f32 %v759, %v759
        %v931 = vmul.f32 %v765, %v765
        %v932 = vmul.f32 %v769, %v769
        %v933 = vmul.f32 %v775, %v775
        %v934 = vmul.f32 %v779, %v779
        %v935 = vmul.f32 %v785, %v785
        %v936 = vmul.f32 %v789, %v789
        %v937 = vmul.f32 %v795, %v795
        %v938 = vmul.f32 %v799, %v799
        %v939 = vmul.f32 %v805, %v805
        %v940 = vmul.f32 %v809, %v809
        %v941 = vmul.f32 %v815, %v815
        %v942 = vmul.f32 %v819, %v819
        %v943 = vmul.f32 %v825, %v825
        %v944 = vmul.f32 %v829, %v829
        %v945 = vadd.f32 %v913, %v929
        %v946 = vadd.f32 %v914, %v930
        %v947 = vadd.f32 %v915, %v931
        %v948 = vadd.f32 %v916, %v932
        %v949 = vadd.f32 %v917, %v933
        %v950 = vadd.f32 %v918, %v934
        %v951 = vadd.f32 %v919, %v935
        %v952 = vadd.f32 %v920, %v936
        %v953 = vadd.f32 %v921, %v937
        %v954 = vadd.f32 %v922, %v938
        %v955 = vadd.f32 %v923, %v939
        %v956 = vadd.f32 %v924, %v940
        %v957 = vadd.f32 %v925, %v941
        %v958 = vadd.f32 %v926, %v942
        %v959 = vadd.f32 %v927, %v943
        %v960 = vadd.f32 %v928, %v944
        %v961 = vmul.f32 %v835, %v835
        %v962 = vmul.f32 %v839, %v839
        %v963 = vmul.f32 %v845, %v845
        %v964 = vmul.f32 %v849, %v849
        %v965 = vmul.f32 %v855, %v855
        %v966 = vmul.f32 %v859, %v859
        %v967 = vmul.f32 %v865, %v865
        %v968 = vmul.f32 %v869, %v869
        %v969 = vmul.f32 %v875, %v875
        %v970 = vmul.f32 %v879, %v879
        %v971 = vmul.f32 %v885, %v885
        %v972 = vmul.f32 %v889, %v889
        %v973 = vmul.f32 %v895, %v895
        %v974 = vmul.f32 %v899, %v899
        %v975 = vmul.f32 %v905, %v905
        %v976 = vmul.f32 %v909, %v909
        %v977 = vadd.f32 %v945, %v961
        %v978 = vadd.f32 %v946, %v962
        %v979 = vadd.f32 %v947, %v963
        %v980 = vadd.f32 %v948, %v964
        %v981 = vadd.f32 %v949, %v965
        %v982 = vadd.f32 %v950, %v966
        %v983 = vadd.f32 %v951, %v967
        %v984 = vadd.f32 %v952, %v968
        %v985 = vadd.f32 %v953, %v969
        %v986 = vadd.f32 %v954, %v970
        %v987 = vadd.f32 %v955, %v971
        %v988 = vadd.f32 %v956, %v972
        %v989 = vadd.f32 %v957, %v973
        %v990 = vadd.f32 %v958, %v974
        %v991 = vadd.f32 %v959, %v975
        %v992 = vadd.f32 %v960, %v976
        %v993 = vrsqrt.pop %v977
        %v994 = vmul.f32 %v977, %v993
        %vm995 = vcmp.eq.f32.partialorder %v977, inf
        %v996 = vsel %vm995, %v977, %v994
        %vm997 = vcmp.eq.f32.partialorder %v977, 0.0
        %v998 = vand.u32 %v977, 2147483648
        %v999 = vsel %vm997, %v998, %v996
        %v1000 = vrsqrt.pop %v978
        %v1001 = vmul.f32 %v978, %v1000
        %vm1002 = vcmp.eq.f32.partialorder %v978, inf
        %v1003 = vsel %vm1002, %v978, %v1001
        %vm1004 = vcmp.eq.f32.partialorder %v978, 0.0
        %v1005 = vand.u32 %v978, 2147483648
        %v1006 = vsel %vm1004, %v1005, %v1003
        %v1007 = vrsqrt.pop %v979
        %v1008 = vmul.f32 %v979, %v1007
        %vm1009 = vcmp.eq.f32.partialorder %v979, inf
        %v1010 = vsel %vm1009, %v979, %v1008
        %vm1011 = vcmp.eq.f32.partialorder %v979, 0.0
        %v1012 = vand.u32 %v979, 2147483648
        %v1013 = vsel %vm1011, %v1012, %v1010
        %v1014 = vrsqrt.pop %v980
        %v1015 = vmul.f32 %v980, %v1014
        %vm1016 = vcmp.eq.f32.partialorder %v980, inf
        %v1017 = vsel %vm1016, %v980, %v1015
        %vm1018 = vcmp.eq.f32.partialorder %v980, 0.0
        %v1019 = vand.u32 %v980, 2147483648
        %v1020 = vsel %vm1018, %v1019, %v1017
        %v1021 = vrsqrt.pop %v981
        %v1022 = vmul.f32 %v981, %v1021
        %vm1023 = vcmp.eq.f32.partialorder %v981, inf
        %v1024 = vsel %vm1023, %v981, %v1022
        %vm1025 = vcmp.eq.f32.partialorder %v981, 0.0
        %v1026 = vand.u32 %v981, 2147483648
        %v1027 = vsel %vm1025, %v1026, %v1024
        %v1028 = vrsqrt.pop %v982
        %v1029 = vmul.f32 %v982, %v1028
        %vm1030 = vcmp.eq.f32.partialorder %v982, inf
        %v1031 = vsel %vm1030, %v982, %v1029
        %vm1032 = vcmp.eq.f32.partialorder %v982, 0.0
        %v1033 = vand.u32 %v982, 2147483648
        %v1034 = vsel %vm1032, %v1033, %v1031
        %v1035 = vrsqrt.pop %v983
        %v1036 = vmul.f32 %v983, %v1035
        %vm1037 = vcmp.eq.f32.partialorder %v983, inf
        %v1038 = vsel %vm1037, %v983, %v1036
        %vm1039 = vcmp.eq.f32.partialorder %v983, 0.0
        %v1040 = vand.u32 %v983, 2147483648
        %v1041 = vsel %vm1039, %v1040, %v1038
        %v1042 = vrsqrt.pop %v984
        %v1043 = vmul.f32 %v984, %v1042
        %vm1044 = vcmp.eq.f32.partialorder %v984, inf
        %v1045 = vsel %vm1044, %v984, %v1043
        %vm1046 = vcmp.eq.f32.partialorder %v984, 0.0
        %v1047 = vand.u32 %v984, 2147483648
        %v1048 = vsel %vm1046, %v1047, %v1045
        %v1049 = vrsqrt.pop %v985
        %v1050 = vmul.f32 %v985, %v1049
        %vm1051 = vcmp.eq.f32.partialorder %v985, inf
        %v1052 = vsel %vm1051, %v985, %v1050
        %vm1053 = vcmp.eq.f32.partialorder %v985, 0.0
        %v1054 = vand.u32 %v985, 2147483648
        %v1055 = vsel %vm1053, %v1054, %v1052
        %v1056 = vrsqrt.pop %v986
        %v1057 = vmul.f32 %v986, %v1056
        %vm1058 = vcmp.eq.f32.partialorder %v986, inf
        %v1059 = vsel %vm1058, %v986, %v1057
        %vm1060 = vcmp.eq.f32.partialorder %v986, 0.0
        %v1061 = vand.u32 %v986, 2147483648
        %v1062 = vsel %vm1060, %v1061, %v1059
        %v1063 = vrsqrt.pop %v987
        %v1064 = vmul.f32 %v987, %v1063
        %vm1065 = vcmp.eq.f32.partialorder %v987, inf
        %v1066 = vsel %vm1065, %v987, %v1064
        %vm1067 = vcmp.eq.f32.partialorder %v987, 0.0
        %v1068 = vand.u32 %v987, 2147483648
        %v1069 = vsel %vm1067, %v1068, %v1066
        %v1070 = vrsqrt.pop %v988
        %v1071 = vmul.f32 %v988, %v1070
        %vm1072 = vcmp.eq.f32.partialorder %v988, inf
        %v1073 = vsel %vm1072, %v988, %v1071
        %vm1074 = vcmp.eq.f32.partialorder %v988, 0.0
        %v1075 = vand.u32 %v988, 2147483648
        %v1076 = vsel %vm1074, %v1075, %v1073
        %v1077 = vrsqrt.pop %v989
        %v1078 = vmul.f32 %v989, %v1077
        %vm1079 = vcmp.eq.f32.partialorder %v989, inf
        %v1080 = vsel %vm1079, %v989, %v1078
        %vm1081 = vcmp.eq.f32.partialorder %v989, 0.0
        %v1082 = vand.u32 %v989, 2147483648
        %v1083 = vsel %vm1081, %v1082, %v1080
        %v1084 = vrsqrt.pop %v990
        %v1085 = vmul.f32 %v990, %v1084
        %vm1086 = vcmp.eq.f32.partialorder %v990, inf
        %v1087 = vsel %vm1086, %v990, %v1085
        %vm1088 = vcmp.eq.f32.partialorder %v990, 0.0
        %v1089 = vand.u32 %v990, 2147483648
        %v1090 = vsel %vm1088, %v1089, %v1087
        %v1091 = vrsqrt.pop %v991
        %v1092 = vmul.f32 %v991, %v1091
        %vm1093 = vcmp.eq.f32.partialorder %v991, inf
        %v1094 = vsel %vm1093, %v991, %v1092
        %vm1095 = vcmp.eq.f32.partialorder %v991, 0.0
        %v1096 = vand.u32 %v991, 2147483648
        %v1097 = vsel %vm1095, %v1096, %v1094
        %v1098 = vrsqrt.pop %v992
        %v1099 = vmul.f32 %v992, %v1098
        %vm1100 = vcmp.eq.f32.partialorder %v992, inf
        %v1101 = vsel %vm1100, %v992, %v1099
        %vm1102 = vcmp.eq.f32.partialorder %v992, 0.0
        %v1103 = vand.u32 %v992, 2147483648
        %v1104 = vsel %vm1102, %v1103, %v1101
        %v1105 = vpack.c.bf16 %v1006, %v999
        %v1106 = vpack.c.bf16 %v1020, %v1013
        %v1107 = vpack.c.bf16 %v1034, %v1027
        %v1108 = vpack.c.bf16 %v1048, %v1041
        %v1109 = vpack.c.bf16 %v1062, %v1055
        %v1110 = vpack.c.bf16 %v1076, %v1069
        %v1111 = vpack.c.bf16 %v1090, %v1083
        %v1112 = vpack.c.bf16 %v1104, %v1097
        %v1113 = vld [vmem:[#allocation8] sm:$0xf]
        %v1114 = vld [vmem:[#allocation8 + $0x4] sm:$0xf]
        %v1115 = vld [vmem:[#allocation8 + $0x8] sm:$0xf]
        %v1116 = vld [vmem:[#allocation8 + $0xc] sm:$0xf]
        %v1117 = vld [vmem:[#allocation8 + $0x10] sm:$0xf]
        %v1118 = vld [vmem:[#allocation8 + $0x14] sm:$0xf]
        %v1119 = vld [vmem:[#allocation8 + $0x18] sm:$0xf]
        %v1120 = vld [vmem:[#allocation8 + $0x1c] sm:$0xf]
        %v1121 = vld [vmem:[#allocation8 + $0x20] sm:$0xf]
        %v1122 = vld [vmem:[#allocation8 + $0x24] sm:$0xf]
        %v1123 = vld [vmem:[#allocation8 + $0x28] sm:$0xf]
        %v1124 = vld [vmem:[#allocation8 + $0x2c] sm:$0xf]
        %v1125 = vld [vmem:[#allocation8 + $0x30] sm:$0xf]
        %v1126 = vld [vmem:[#allocation8 + $0x34] sm:$0xf]
        %v1127 = vld [vmem:[#allocation8 + $0x38] sm:$0xf]
        %v1128 = vld [vmem:[#allocation8 + $0x3c] sm:$0xf]
        %v1129 = vld [vmem:[#allocation8 + $0x40] sm:$0xf]
        %v1130 = vld [vmem:[#allocation8 + $0x44] sm:$0xf]
        %v1131 = vld [vmem:[#allocation8 + $0x48] sm:$0xf]
        %v1132 = vld [vmem:[#allocation8 + $0x4c] sm:$0xf]
        %v1133 = vld [vmem:[#allocation8 + $0x50] sm:$0xf]
        %v1134 = vld [vmem:[#allocation8 + $0x54] sm:$0xf]
        %v1135 = vld [vmem:[#allocation8 + $0x58] sm:$0xf]
        %v1136 = vld [vmem:[#allocation8 + $0x5c] sm:$0xf]
        %v1137 = vld [vmem:[#allocation8 + $0x60] sm:$0xf]
        %v1138 = vld [vmem:[#allocation8 + $0x64] sm:$0xf]
        %v1139 = vld [vmem:[#allocation8 + $0x68] sm:$0xf]
        %v1140 = vld [vmem:[#allocation8 + $0x6c] sm:$0xf]
        %v1141 = vld [vmem:[#allocation8 + $0x70] sm:$0xf]
        %v1142 = vld [vmem:[#allocation8 + $0x74] sm:$0xf]
        %v1143 = vld [vmem:[#allocation8 + $0x78] sm:$0xf]
        %v1144 = vld [vmem:[#allocation8 + $0x7c] sm:$0xf]
        %v1145 = vld [vmem:[%s4] sm:$0x1]
        %v1147 = vlaneseq
        %v1148 = vshrl.u32 %v1147, 7
        %v1149 = vsub.s32 0, %v1148
        %v1150 = vrot.slane %v1145, %v1149
        %v1184 = vunpack.c.l.b16 %v1113
        %v1185 = vunpack.c.l.b16 %v1114
        %v1186 = vunpack.c.l.b16 %v1115
        %v1187 = vunpack.c.l.b16 %v1116
        %v1188 = vunpack.c.l.b16 %v1117
        %v1189 = vunpack.c.l.b16 %v1118
        %v1190 = vunpack.c.l.b16 %v1119
        %v1191 = vunpack.c.l.b16 %v1120
        %v1192 = vunpack.c.l.b16 %v1121
        %v1193 = vunpack.c.l.b16 %v1122
        %v1194 = vunpack.c.l.b16 %v1123
        %v1195 = vunpack.c.l.b16 %v1124
        %v1196 = vunpack.c.l.b16 %v1125
        %v1197 = vunpack.c.l.b16 %v1126
        %v1198 = vunpack.c.l.b16 %v1127
        %v1199 = vunpack.c.l.b16 %v1128
        %v1200 = vunpack.c.l.b16 %v1129
        %v1201 = vunpack.c.l.b16 %v1130
        %v1202 = vunpack.c.l.b16 %v1131
        %v1203 = vunpack.c.l.b16 %v1132
        %v1204 = vunpack.c.l.b16 %v1133
        %v1205 = vunpack.c.l.b16 %v1134
        %v1206 = vunpack.c.l.b16 %v1135
        %v1207 = vunpack.c.l.b16 %v1136
        %v1208 = vunpack.c.l.b16 %v1137
        %v1209 = vunpack.c.l.b16 %v1138
        %v1210 = vunpack.c.l.b16 %v1139
        %v1211 = vunpack.c.l.b16 %v1140
        %v1212 = vunpack.c.l.b16 %v1141
        %v1213 = vunpack.c.l.b16 %v1142
        %v1214 = vunpack.c.l.b16 %v1143
        %v1215 = vunpack.c.l.b16 %v1144
        %v1216 = vpack.c.b16 %v1185, %v1184
        %v1217 = vpack.c.b16 %v1187, %v1186
        %v1218 = vpack.c.b16 %v1189, %v1188
        %v1219 = vpack.c.b16 %v1191, %v1190
        %v1220 = vpack.c.b16 %v1193, %v1192
        %v1221 = vpack.c.b16 %v1195, %v1194
        %v1222 = vpack.c.b16 %v1197, %v1196
        %v1223 = vpack.c.b16 %v1199, %v1198
        %v1224 = vpack.c.b16 %v1201, %v1200
        %v1225 = vpack.c.b16 %v1203, %v1202
        %v1226 = vpack.c.b16 %v1205, %v1204
        %v1227 = vpack.c.b16 %v1207, %v1206
        %v1228 = vpack.c.b16 %v1209, %v1208
        %v1229 = vpack.c.b16 %v1211, %v1210
        %v1230 = vpack.c.b16 %v1213, %v1212
        %v1231 = vpack.c.b16 %v1215, %v1214
        %1248 = vmatprep.subr.bf16.mxu0 0
        %1249 = vmatpush1.bf16.msra.mxu0 %v1216
        %1250 = vmatprep.subr.bf16.mxu0 0
        %1251 = vmatpush1.bf16.msra.mxu0 %v1217
        %1252 = vmatprep.subr.bf16.mxu0 0
        %1253 = vmatpush1.bf16.msra.mxu0 %v1218
        %1254 = vmatprep.subr.bf16.mxu0 0
        %1255 = vmatpush1.bf16.msra.mxu0 %v1219
        %1256 = vmatprep.subr.bf16.mxu0 0
        %1257 = vmatpush1.bf16.msra.mxu0 %v1220
        %1258 = vmatprep.subr.bf16.mxu0 0
        %1259 = vmatpush1.bf16.msra.mxu0 %v1221
        %1260 = vmatprep.subr.bf16.mxu0 0
        %1261 = vmatpush1.bf16.msra.mxu0 %v1222
        %1262 = vmatprep.subr.bf16.mxu0 0
        %1263 = vmatpush1.bf16.msra.mxu0 %v1223
        %1264 = vmatprep.subr.bf16.mxu0 0
        %1265 = vmatpush1.bf16.msra.mxu0 %v1224
        %1266 = vmatprep.subr.bf16.mxu0 0
        %1267 = vmatpush1.bf16.msra.mxu0 %v1225
        %1268 = vmatprep.subr.bf16.mxu0 0
        %1269 = vmatpush1.bf16.msra.mxu0 %v1226
        %1270 = vmatprep.subr.bf16.mxu0 0
        %1271 = vmatpush1.bf16.msra.mxu0 %v1227
        %1272 = vmatprep.subr.bf16.mxu0 0
        %1273 = vmatpush1.bf16.msra.mxu0 %v1228
        %1274 = vmatprep.subr.bf16.mxu0 0
        %1275 = vmatpush1.bf16.msra.mxu0 %v1229
        %1276 = vmatprep.subr.bf16.mxu0 0
        %1277 = vmatpush1.bf16.msra.mxu0 %v1230
        %1278 = vmatprep.subr.bf16.mxu0 0
        %1279 = vmatpush1.bf16.msra.mxu0 %v1231
        %1280 = vmatprep.mubr.bf16.mxu0 %v1105
        %1281 = vmatmul.mubr.bf16.gmra.mrb[0].mxu0 %v536
        %v1282 = vpop.f32.mrb[0].mxu0
        %v1283 = vadd.f32 %v1150, %v1282
        %v1284 = vpop.f32.mrb[0].mxu0
        %v1285 = vpop.f32.mrb[0].mxu0
        %v1286 = vadd.f32 %v1150, %v1285
        %v1287 = vpop.f32.mrb[0].mxu0
        %1288 = vmatprep.mubr.bf16.mxu0 %v1106
        %1289 = vmatmul.mubr.bf16.gmra.mrb[0].mxu0 %v537
        %v1290 = vpop.f32.mrb[0].mxu0
        %v1291 = vadd.f32 %v1150, %v1290
        %v1292 = vpop.f32.mrb[0].mxu0
        %v1293 = vpop.f32.mrb[0].mxu0
        %v1294 = vadd.f32 %v1150, %v1293
        %v1295 = vpop.f32.mrb[0].mxu0
        %1296 = vmatprep.mubr.bf16.mxu0 %v1107
        %1297 = vmatmul.mubr.bf16.gmra.mrb[0].mxu0 %v538
        %v1298 = vpop.f32.mrb[0].mxu0
        %v1299 = vadd.f32 %v1150, %v1298
        %v1300 = vpop.f32.mrb[0].mxu0
        %v1301 = vpop.f32.mrb[0].mxu0
        %v1302 = vadd.f32 %v1150, %v1301
        %v1303 = vpop.f32.mrb[0].mxu0
        %1304 = vmatprep.mubr.bf16.mxu0 %v1108
        %1305 = vmatmul.mubr.bf16.gmra.mrb[0].mxu0 %v539
        %v1306 = vpop.f32.mrb[0].mxu0
        %v1307 = vadd.f32 %v1150, %v1306
        %v1308 = vpop.f32.mrb[0].mxu0
        %v1309 = vpop.f32.mrb[0].mxu0
        %v1310 = vadd.f32 %v1150, %v1309
        %v1311 = vpop.f32.mrb[0].mxu0
        %1312 = vmatprep.mubr.bf16.mxu0 %v1109
        %1313 = vmatmul.mubr.bf16.gmra.mrb[0].mxu0 %v540
        %v1314 = vpop.f32.mrb[0].mxu0
        %v1315 = vadd.f32 %v1150, %v1314
        %v1316 = vpop.f32.mrb[0].mxu0
        %v1317 = vpop.f32.mrb[0].mxu0
        %v1318 = vadd.f32 %v1150, %v1317
        %v1319 = vpop.f32.mrb[0].mxu0
        %1320 = vmatprep.mubr.bf16.mxu0 %v1110
        %1321 = vmatmul.mubr.bf16.gmra.mrb[0].mxu0 %v541
        %v1322 = vpop.f32.mrb[0].mxu0
        %v1323 = vadd.f32 %v1150, %v1322
        %v1324 = vpop.f32.mrb[0].mxu0
        %v1325 = vpop.f32.mrb[0].mxu0
        %v1326 = vadd.f32 %v1150, %v1325
        %v1327 = vpop.f32.mrb[0].mxu0
        %1328 = vmatprep.mubr.bf16.mxu0 %v1111
        %1329 = vmatmul.mubr.bf16.gmra.mrb[0].mxu0 %v542
        %v1330 = vpop.f32.mrb[0].mxu0
        %v1331 = vadd.f32 %v1150, %v1330
        %v1332 = vpop.f32.mrb[0].mxu0
        %v1333 = vpop.f32.mrb[0].mxu0
        %v1334 = vadd.f32 %v1150, %v1333
        %v1335 = vpop.f32.mrb[0].mxu0
        %1336 = vmatprep.mubr.bf16.mxu0 %v1112
        %1337 = vmatmul.mubr.bf16.gmra.mrb[0].mxu0 %v543
        %v1338 = vpop.f32.mrb[0].mxu0
        %v1339 = vadd.f32 %v1150, %v1338
        %v1340 = vpop.f32.mrb[0].mxu0
        %v1341 = vpop.f32.mrb[0].mxu0
        %v1342 = vadd.f32 %v1150, %v1341
        %v1343 = vpop.f32.mrb[0].mxu0
        %1344 = vdwg.mxu0
        %v1345 = vxor.u32 %v1283, 2147483648
        %v1346 = vxor.u32 %v1286, 2147483648
        %v1347 = vxor.u32 %v1291, 2147483648
        %v1348 = vxor.u32 %v1294, 2147483648
        %v1349 = vxor.u32 %v1299, 2147483648
        %v1350 = vxor.u32 %v1302, 2147483648
        %v1351 = vxor.u32 %v1307, 2147483648
        %v1352 = vxor.u32 %v1310, 2147483648
        %v1353 = vxor.u32 %v1315, 2147483648
        %v1354 = vxor.u32 %v1318, 2147483648
        %v1355 = vxor.u32 %v1323, 2147483648
        %v1356 = vxor.u32 %v1326, 2147483648
        %v1357 = vxor.u32 %v1331, 2147483648
        %v1358 = vxor.u32 %v1334, 2147483648
        %v1359 = vxor.u32 %v1339, 2147483648
        %v1360 = vxor.u32 %v1342, 2147483648
        %v1361 = vmul.f32 %v1345, 1.442695
        %v1362 = vpow.pop %v1361
        %v1363 = vmul.f32 %v1346, 1.442695
        %v1364 = vpow.pop %v1363
        %v1365 = vmul.f32 %v1347, 1.442695
        %v1366 = vpow.pop %v1365
        %v1367 = vmul.f32 %v1348, 1.442695
        %v1368 = vpow.pop %v1367
        %v1369 = vmul.f32 %v1349, 1.442695
        %v1370 = vpow.pop %v1369
        %v1371 = vmul.f32 %v1350, 1.442695
        %v1372 = vpow.pop %v1371
        %v1373 = vmul.f32 %v1351, 1.442695
        %v1374 = vpow.pop %v1373
        %v1375 = vmul.f32 %v1352, 1.442695
        %v1376 = vpow.pop %v1375
        %v1377 = vmul.f32 %v1353, 1.442695
        %v1378 = vpow.pop %v1377
        %v1379 = vmul.f32 %v1354, 1.442695
        %v1380 = vpow.pop %v1379
        %v1381 = vmul.f32 %v1355, 1.442695
        %v1382 = vpow.pop %v1381
        %v1383 = vmul.f32 %v1356, 1.442695
        %v1384 = vpow.pop %v1383
        %v1385 = vmul.f32 %v1357, 1.442695
        %v1386 = vpow.pop %v1385
        %v1387 = vmul.f32 %v1358, 1.442695
        %v1388 = vpow.pop %v1387
        %v1389 = vmul.f32 %v1359, 1.442695
        %v1390 = vpow.pop %v1389
        %v1391 = vmul.f32 %v1360, 1.442695
        %v1392 = vpow.pop %v1391
        %v1393 = vadd.f32 %v1362, 1.0
        %v1394 = vadd.f32 %v1364, 1.0
        %v1395 = vadd.f32 %v1366, 1.0
        %v1396 = vadd.f32 %v1368, 1.0
        %v1397 = vadd.f32 %v1370, 1.0
        %v1398 = vadd.f32 %v1372, 1.0
        %v1399 = vadd.f32 %v1374, 1.0
        %v1400 = vadd.f32 %v1376, 1.0
        %v1401 = vadd.f32 %v1378, 1.0
        %v1402 = vadd.f32 %v1380, 1.0
        %v1403 = vadd.f32 %v1382, 1.0
        %v1404 = vadd.f32 %v1384, 1.0
        %v1405 = vadd.f32 %v1386, 1.0
        %v1406 = vadd.f32 %v1388, 1.0
        %v1407 = vadd.f32 %v1390, 1.0
        %v1408 = vadd.f32 %v1392, 1.0
        %v1409 = vrcp.pop %v1393
        %v1410 = vmul.f32 1.0, %v1409
        %v1411 = vrcp.pop %v1394
        %v1412 = vmul.f32 1.0, %v1411
        %v1413 = vrcp.pop %v1395
        %v1414 = vmul.f32 1.0, %v1413
        %v1415 = vrcp.pop %v1396
        %v1416 = vmul.f32 1.0, %v1415
        %v1417 = vrcp.pop %v1397
        %v1418 = vmul.f32 1.0, %v1417
        %v1419 = vrcp.pop %v1398
        %v1420 = vmul.f32 1.0, %v1419
        %v1421 = vrcp.pop %v1399
        %v1422 = vmul.f32 1.0, %v1421
        %v1423 = vrcp.pop %v1400
        %v1424 = vmul.f32 1.0, %v1423
        %v1425 = vrcp.pop %v1401
        %v1426 = vmul.f32 1.0, %v1425
        %v1427 = vrcp.pop %v1402
        %v1428 = vmul.f32 1.0, %v1427
        %v1429 = vrcp.pop %v1403
        %v1430 = vmul.f32 1.0, %v1429
        %v1431 = vrcp.pop %v1404
        %v1432 = vmul.f32 1.0, %v1431
        %v1433 = vrcp.pop %v1405
        %v1434 = vmul.f32 1.0, %v1433
        %v1435 = vrcp.pop %v1406
        %v1436 = vmul.f32 1.0, %v1435
        %v1437 = vrcp.pop %v1407
        %v1438 = vmul.f32 1.0, %v1437
        %v1439 = vrcp.pop %v1408
        %v1440 = vmul.f32 1.0, %v1439
        %v1441 = vmul.f32 %v1283, %v1410
        %v1442 = vmul.f32 %v1286, %v1412
        %v1443 = vmul.f32 %v1291, %v1414
        %v1444 = vmul.f32 %v1294, %v1416
        %v1445 = vmul.f32 %v1299, %v1418
        %v1446 = vmul.f32 %v1302, %v1420
        %v1447 = vmul.f32 %v1307, %v1422
        %v1448 = vmul.f32 %v1310, %v1424
        %v1449 = vmul.f32 %v1315, %v1426
        %v1450 = vmul.f32 %v1318, %v1428
        %v1451 = vmul.f32 %v1323, %v1430
        %v1452 = vmul.f32 %v1326, %v1432
        %v1453 = vmul.f32 %v1331, %v1434
        %v1454 = vmul.f32 %v1334, %v1436
        %v1455 = vmul.f32 %v1339, %v1438
        %v1456 = vmul.f32 %v1342, %v1440
        %v1457 = vpack.c.bf16 %v1442, %v1441
        %v1458 = vpack.c.bf16 %v1444, %v1443
        %v1459 = vpack.c.bf16 %v1446, %v1445
        %v1460 = vpack.c.bf16 %v1448, %v1447
        %v1461 = vpack.c.bf16 %v1450, %v1449
        %v1462 = vpack.c.bf16 %v1452, %v1451
        %v1463 = vpack.c.bf16 %v1454, %v1453
        %v1464 = vpack.c.bf16 %v1456, %v1455
        %v1465 = vld [vmem:[#allocation10] sm:$0xff]
        %v1466 = vld [vmem:[#allocation10 + $0x8] sm:$0xff]
        %v1467 = vld [vmem:[#allocation10 + $0x10] sm:$0xff]
        %v1468 = vld [vmem:[#allocation10 + $0x18] sm:$0xff]
        %v1469 = vld [vmem:[#allocation10 + $0x20] sm:$0xff]
        %v1470 = vld [vmem:[#allocation10 + $0x28] sm:$0xff]
        %v1471 = vld [vmem:[#allocation10 + $0x30] sm:$0xff]
        %v1472 = vld [vmem:[#allocation10 + $0x38] sm:$0xff]
        %v1473 = vld [vmem:[#allocation10 + $0x40] sm:$0xff]
        %v1474 = vld [vmem:[#allocation10 + $0x48] sm:$0xff]
        %v1475 = vld [vmem:[#allocation10 + $0x50] sm:$0xff]
        %v1476 = vld [vmem:[#allocation10 + $0x58] sm:$0xff]
        %v1477 = vld [vmem:[#allocation10 + $0x60] sm:$0xff]
        %v1478 = vld [vmem:[#allocation10 + $0x68] sm:$0xff]
        %v1479 = vld [vmem:[#allocation10 + $0x70] sm:$0xff]
        %v1480 = vld [vmem:[#allocation10 + $0x78] sm:$0xff]
        %v1481 = vld [vmem:[%s6] sm:$0x3]
        %v1483 = vlaneseq
        %v1484 = vshrl.u32 %v1483, 7
        %v1485 = vsub.s32 0, %v1484
        %v1486 = vrot.slane %v1481, %v1485
        %v1487 = vlaneseq
        %v1488 = vshrl.u32 %v1487, 7
        %v1489 = vsub.s32 1, %v1488
        %v1490 = vrot.slane %v1481, %v1489
        %v1509 = vunpack.c.l.b16 %v1465
        %v1510 = vunpack.c.h.b16 %v1465
        %v1511 = vunpack.c.l.b16 %v1466
        %v1512 = vunpack.c.h.b16 %v1466
        %v1513 = vunpack.c.l.b16 %v1467
        %v1514 = vunpack.c.h.b16 %v1467
        %v1515 = vunpack.c.l.b16 %v1468
        %v1516 = vunpack.c.h.b16 %v1468
        %v1517 = vunpack.c.l.b16 %v1469
        %v1518 = vunpack.c.h.b16 %v1469
        %v1519 = vunpack.c.l.b16 %v1470
        %v1520 = vunpack.c.h.b16 %v1470
        %v1521 = vunpack.c.l.b16 %v1471
        %v1522 = vunpack.c.h.b16 %v1471
        %v1523 = vunpack.c.l.b16 %v1472
        %v1524 = vunpack.c.h.b16 %v1472
        %v1525 = vunpack.c.l.b16 %v1473
        %v1526 = vunpack.c.h.b16 %v1473
        %v1527 = vunpack.c.l.b16 %v1474
        %v1528 = vunpack.c.h.b16 %v1474
        %v1529 = vunpack.c.l.b16 %v1475
        %v1530 = vunpack.c.h.b16 %v1475
        %v1531 = vunpack.c.l.b16 %v1476
        %v1532 = vunpack.c.h.b16 %v1476
        %v1533 = vunpack.c.l.b16 %v1477
        %v1534 = vunpack.c.h.b16 %v1477
        %v1535 = vunpack.c.l.b16 %v1478
        %v1536 = vunpack.c.h.b16 %v1478
        %v1537 = vunpack.c.l.b16 %v1479
        %v1538 = vunpack.c.h.b16 %v1479
        %v1539 = vunpack.c.l.b16 %v1480
        %v1540 = vunpack.c.h.b16 %v1480
        %v1541 = vpack.c.b16 %v1511, %v1509
        %v1542 = vpack.c.b16 %v1512, %v1510
        %v1543 = vpack.c.b16 %v1515, %v1513
        %v1544 = vpack.c.b16 %v1516, %v1514
        %v1545 = vpack.c.b16 %v1519, %v1517
        %v1546 = vpack.c.b16 %v1520, %v1518
        %v1547 = vpack.c.b16 %v1523, %v1521
        %v1548 = vpack.c.b16 %v1524, %v1522
        %v1549 = vpack.c.b16 %v1527, %v1525
        %v1550 = vpack.c.b16 %v1528, %v1526
        %v1551 = vpack.c.b16 %v1531, %v1529
        %v1552 = vpack.c.b16 %v1532, %v1530
        %v1553 = vpack.c.b16 %v1535, %v1533
        %v1554 = vpack.c.b16 %v1536, %v1534
        %v1555 = vpack.c.b16 %v1539, %v1537
        %v1556 = vpack.c.b16 %v1540, %v1538
        %1573 = vmatprep.subr.bf16.mxu0 %v1542
        %1574 = vmatpush1.bf16.msra.mxu0 %v1541
        %1575 = vmatprep.subr.bf16.mxu0 %v1544
        %1576 = vmatpush1.bf16.msra.mxu0 %v1543
        %1577 = vmatprep.subr.bf16.mxu0 %v1546
        %1578 = vmatpush1.bf16.msra.mxu0 %v1545
        %1579 = vmatprep.subr.bf16.mxu0 %v1548
        %1580 = vmatpush1.bf16.msra.mxu0 %v1547
        %1581 = vmatprep.subr.bf16.mxu0 %v1550
        %1582 = vmatpush1.bf16.msra.mxu0 %v1549
        %1583 = vmatprep.subr.bf16.mxu0 %v1552
        %1584 = vmatpush1.bf16.msra.mxu0 %v1551
        %1585 = vmatprep.subr.bf16.mxu0 %v1554
        %1586 = vmatpush1.bf16.msra.mxu0 %v1553
        %1587 = vmatprep.subr.bf16.mxu0 %v1556
        %1588 = vmatpush1.bf16.msra.mxu0 %v1555
        %1589 = vmatprep.subr.bf16.mxu0 0
        %1590 = vmatpush1.bf16.msra.mxu0 0
        %1591 = vmatprep.subr.bf16.mxu0 0
        %1592 = vmatpush1.bf16.msra.mxu0 0
        %1593 = vmatprep.subr.bf16.mxu0 0
        %1594 = vmatpush1.bf16.msra.mxu0 0
        %1595 = vmatprep.subr.bf16.mxu0 0
        %1596 = vmatpush1.bf16.msra.mxu0 0
        %1597 = vmatprep.subr.bf16.mxu0 0
        %1598 = vmatpush1.bf16.msra.mxu0 0
        %1599 = vmatprep.subr.bf16.mxu0 0
        %1600 = vmatpush1.bf16.msra.mxu0 0
        %1601 = vmatprep.subr.bf16.mxu0 0
        %1602 = vmatpush1.bf16.msra.mxu0 0
        %1603 = vmatprep.subr.bf16.mxu0 0
        %1604 = vmatpush1.bf16.msra.mxu0 0
        %1605 = vmatprep.mubr.bf16.mxu0 0
        %1606 = vmatmul.mubr.bf16.gmra.mrb[0].mxu0 %v1457
        %v1607 = vpop.f32.mrb[0].mxu0
        %v1608 = vadd.f32 %v1486, %v1607
        %v1609 = vpop.f32.mrb[0].mxu0
        %v1610 = vadd.f32 %v1490, %v1609
        %v1611 = vpop.f32.mrb[0].mxu0
        %v1612 = vadd.f32 %v1486, %v1611
        %v1613 = vpop.f32.mrb[0].mxu0
        %v1614 = vadd.f32 %v1490, %v1613
        %1615 = vmatprep.mubr.bf16.mxu0 0
        %1616 = vmatmul.mubr.bf16.gmra.mrb[0].mxu0 %v1458
        %v1617 = vpop.f32.mrb[0].mxu0
        %v1618 = vadd.f32 %v1486, %v1617
        %v1619 = vpop.f32.mrb[0].mxu0
        %v1620 = vadd.f32 %v1490, %v1619
        %v1621 = vpop.f32.mrb[0].mxu0
        %v1622 = vadd.f32 %v1486, %v1621
        %v1623 = vpop.f32.mrb[0].mxu0
        %v1624 = vadd.f32 %v1490, %v1623
        %1625 = vmatprep.mubr.bf16.mxu0 0
        %1626 = vmatmul.mubr.bf16.gmra.mrb[0].mxu0 %v1459
        %v1627 = vpop.f32.mrb[0].mxu0
        %v1628 = vadd.f32 %v1486, %v1627
        %v1629 = vpop.f32.mrb[0].mxu0
        %v1630 = vadd.f32 %v1490, %v1629
        %v1631 = vpop.f32.mrb[0].mxu0
        %v1632 = vadd.f32 %v1486, %v1631
        %v1633 = vpop.f32.mrb[0].mxu0
        %v1634 = vadd.f32 %v1490, %v1633
        %1635 = vmatprep.mubr.bf16.mxu0 0
        %1636 = vmatmul.mubr.bf16.gmra.mrb[0].mxu0 %v1460
        %v1637 = vpop.f32.mrb[0].mxu0
        %v1638 = vadd.f32 %v1486, %v1637
        %v1639 = vpop.f32.mrb[0].mxu0
        %v1640 = vadd.f32 %v1490, %v1639
        %v1641 = vpop.f32.mrb[0].mxu0
        %v1642 = vadd.f32 %v1486, %v1641
        %v1643 = vpop.f32.mrb[0].mxu0
        %v1644 = vadd.f32 %v1490, %v1643
        %1645 = vmatprep.mubr.bf16.mxu0 0
        %1646 = vmatmul.mubr.bf16.gmra.mrb[0].mxu0 %v1461
        %v1647 = vpop.f32.mrb[0].mxu0
        %v1648 = vadd.f32 %v1486, %v1647
        %v1649 = vpop.f32.mrb[0].mxu0
        %v1650 = vadd.f32 %v1490, %v1649
        %v1651 = vpop.f32.mrb[0].mxu0
        %v1652 = vadd.f32 %v1486, %v1651
        %v1653 = vpop.f32.mrb[0].mxu0
        %v1654 = vadd.f32 %v1490, %v1653
        %1655 = vmatprep.mubr.bf16.mxu0 0
        %1656 = vmatmul.mubr.bf16.gmra.mrb[0].mxu0 %v1462
        %v1657 = vpop.f32.mrb[0].mxu0
        %v1658 = vadd.f32 %v1486, %v1657
        %v1659 = vpop.f32.mrb[0].mxu0
        %v1660 = vadd.f32 %v1490, %v1659
        %v1661 = vpop.f32.mrb[0].mxu0
        %v1662 = vadd.f32 %v1486, %v1661
        %v1663 = vpop.f32.mrb[0].mxu0
        %v1664 = vadd.f32 %v1490, %v1663
        %1665 = vmatprep.mubr.bf16.mxu0 0
        %1666 = vmatmul.mubr.bf16.gmra.mrb[0].mxu0 %v1463
        %v1667 = vpop.f32.mrb[0].mxu0
        %v1668 = vadd.f32 %v1486, %v1667
        %v1669 = vpop.f32.mrb[0].mxu0
        %v1670 = vadd.f32 %v1490, %v1669
        %v1671 = vpop.f32.mrb[0].mxu0
        %v1672 = vadd.f32 %v1486, %v1671
        %v1673 = vpop.f32.mrb[0].mxu0
        %v1674 = vadd.f32 %v1490, %v1673
        %1675 = vmatprep.mubr.bf16.mxu0 0
        %1676 = vmatmul.mubr.bf16.gmra.mrb[0].mxu0 %v1464
        %v1677 = vpop.f32.mrb[0].mxu0
        %v1678 = vadd.f32 %v1486, %v1677
        %v1679 = vpop.f32.mrb[0].mxu0
        %v1680 = vadd.f32 %v1490, %v1679
        %v1681 = vpop.f32.mrb[0].mxu0
        %v1682 = vadd.f32 %v1486, %v1681
        %v1683 = vpop.f32.mrb[0].mxu0
        %v1684 = vadd.f32 %v1490, %v1683
        %1685 = vdwg.mxu0
        %v1686 = vxor.u32 %v1608, 2147483648
        %v1687 = vxor.u32 %v1612, 2147483648
        %v1688 = vxor.u32 %v1618, 2147483648
        %v1689 = vxor.u32 %v1622, 2147483648
        %v1690 = vxor.u32 %v1628, 2147483648
        %v1691 = vxor.u32 %v1632, 2147483648
        %v1692 = vxor.u32 %v1638, 2147483648
        %v1693 = vxor.u32 %v1642, 2147483648
        %v1694 = vxor.u32 %v1648, 2147483648
        %v1695 = vxor.u32 %v1652, 2147483648
        %v1696 = vxor.u32 %v1658, 2147483648
        %v1697 = vxor.u32 %v1662, 2147483648
        %v1698 = vxor.u32 %v1668, 2147483648
        %v1699 = vxor.u32 %v1672, 2147483648
        %v1700 = vxor.u32 %v1678, 2147483648
        %v1701 = vxor.u32 %v1682, 2147483648
        %v1702 = vmul.f32 %v1686, 1.442695
        %v1703 = vpow.pop %v1702
        %v1704 = vmul.f32 %v1687, 1.442695
        %v1705 = vpow.pop %v1704
        %v1706 = vmul.f32 %v1688, 1.442695
        %v1707 = vpow.pop %v1706
        %v1708 = vmul.f32 %v1689, 1.442695
        %v1709 = vpow.pop %v1708
        %v1710 = vmul.f32 %v1690, 1.442695
        %v1711 = vpow.pop %v1710
        %v1712 = vmul.f32 %v1691, 1.442695
        %v1713 = vpow.pop %v1712
        %v1714 = vmul.f32 %v1692, 1.442695
        %v1715 = vpow.pop %v1714
        %v1716 = vmul.f32 %v1693, 1.442695
        %v1717 = vpow.pop %v1716
        %v1718 = vmul.f32 %v1694, 1.442695
        %v1719 = vpow.pop %v1718
        %v1720 = vmul.f32 %v1695, 1.442695
        %v1721 = vpow.pop %v1720
        %v1722 = vmul.f32 %v1696, 1.442695
        %v1723 = vpow.pop %v1722
        %v1724 = vmul.f32 %v1697, 1.442695
        %v1725 = vpow.pop %v1724
        %v1726 = vmul.f32 %v1698, 1.442695
        %v1727 = vpow.pop %v1726
        %v1728 = vmul.f32 %v1699, 1.442695
        %v1729 = vpow.pop %v1728
        %v1730 = vmul.f32 %v1700, 1.442695
        %v1731 = vpow.pop %v1730
        %v1732 = vmul.f32 %v1701, 1.442695
        %v1733 = vpow.pop %v1732
        %v1734 = vadd.f32 %v1703, 1.0
        %v1735 = vadd.f32 %v1705, 1.0
        %v1736 = vadd.f32 %v1707, 1.0
        %v1737 = vadd.f32 %v1709, 1.0
        %v1738 = vadd.f32 %v1711, 1.0
        %v1739 = vadd.f32 %v1713, 1.0
        %v1740 = vadd.f32 %v1715, 1.0
        %v1741 = vadd.f32 %v1717, 1.0
        %v1742 = vadd.f32 %v1719, 1.0
        %v1743 = vadd.f32 %v1721, 1.0
        %v1744 = vadd.f32 %v1723, 1.0
        %v1745 = vadd.f32 %v1725, 1.0
        %v1746 = vadd.f32 %v1727, 1.0
        %v1747 = vadd.f32 %v1729, 1.0
        %v1748 = vadd.f32 %v1731, 1.0
        %v1749 = vadd.f32 %v1733, 1.0
        %v1750 = vrcp.pop %v1734
        %v1751 = vmul.f32 1.0, %v1750
        %v1752 = vrcp.pop %v1735
        %v1753 = vmul.f32 1.0, %v1752
        %v1754 = vrcp.pop %v1736
        %v1755 = vmul.f32 1.0, %v1754
        %v1756 = vrcp.pop %v1737
        %v1757 = vmul.f32 1.0, %v1756
        %v1758 = vrcp.pop %v1738
        %v1759 = vmul.f32 1.0, %v1758
        %v1760 = vrcp.pop %v1739
        %v1761 = vmul.f32 1.0, %v1760
        %v1762 = vrcp.pop %v1740
        %v1763 = vmul.f32 1.0, %v1762
        %v1764 = vrcp.pop %v1741
        %v1765 = vmul.f32 1.0, %v1764
        %v1766 = vrcp.pop %v1742
        %v1767 = vmul.f32 1.0, %v1766
        %v1768 = vrcp.pop %v1743
        %v1769 = vmul.f32 1.0, %v1768
        %v1770 = vrcp.pop %v1744
        %v1771 = vmul.f32 1.0, %v1770
        %v1772 = vrcp.pop %v1745
        %v1773 = vmul.f32 1.0, %v1772
        %v1774 = vrcp.pop %v1746
        %v1775 = vmul.f32 1.0, %v1774
        %v1776 = vrcp.pop %v1747
        %v1777 = vmul.f32 1.0, %v1776
        %v1778 = vrcp.pop %v1748
        %v1779 = vmul.f32 1.0, %v1778
        %v1780 = vrcp.pop %v1749
        %v1781 = vmul.f32 1.0, %v1780
        %v1782 = vmul.f32 %v1608, %v1751
        %v1783 = vmul.f32 %v1612, %v1753
        %v1784 = vmul.f32 %v1618, %v1755
        %v1785 = vmul.f32 %v1622, %v1757
        %v1786 = vmul.f32 %v1628, %v1759
        %v1787 = vmul.f32 %v1632, %v1761
        %v1788 = vmul.f32 %v1638, %v1763
        %v1789 = vmul.f32 %v1642, %v1765
        %v1790 = vmul.f32 %v1648, %v1767
        %v1791 = vmul.f32 %v1652, %v1769
        %v1792 = vmul.f32 %v1658, %v1771
        %v1793 = vmul.f32 %v1662, %v1773
        %v1794 = vmul.f32 %v1668, %v1775
        %v1795 = vmul.f32 %v1672, %v1777
        %v1796 = vmul.f32 %v1678, %v1779
        %v1797 = vmul.f32 %v1682, %v1781
        %1798 = vst [vmem:[%s435] sm:$0xff] %v1782
        %1799 = vst [vmem:[%s435 + $0x8] sm:$0xff] %v1783
        %1800 = vst [vmem:[%s435 + $0x10] sm:$0xff] %v1784
        %1801 = vst [vmem:[%s435 + $0x18] sm:$0xff] %v1785
        %1802 = vst [vmem:[%s435 + $0x20] sm:$0xff] %v1786
        %1803 = vst [vmem:[%s435 + $0x28] sm:$0xff] %v1787
        %1804 = vst [vmem:[%s435 + $0x30] sm:$0xff] %v1788
        %1805 = vst [vmem:[%s435 + $0x38] sm:$0xff] %v1789
        %1806 = vst [vmem:[%s435 + $0x40] sm:$0xff] %v1790
        %1807 = vst [vmem:[%s435 + $0x48] sm:$0xff] %v1791
        %1808 = vst [vmem:[%s435 + $0x50] sm:$0xff] %v1792
        %1809 = vst [vmem:[%s435 + $0x58] sm:$0xff] %v1793
        %1810 = vst [vmem:[%s435 + $0x60] sm:$0xff] %v1794
        %1811 = vst [vmem:[%s435 + $0x68] sm:$0xff] %v1795
        %1812 = vst [vmem:[%s435 + $0x70] sm:$0xff] %v1796
        %1813 = vst [vmem:[%s435 + $0x78] sm:$0xff] %v1797
        %v1814 = vmul.f32 %v1610, %v677
        %v1815 = vmul.f32 %v1614, %v681
        %v1816 = vmul.f32 %v1620, %v687
        %v1817 = vmul.f32 %v1624, %v691
        %v1818 = vmul.f32 %v1630, %v697
        %v1819 = vmul.f32 %v1634, %v701
        %v1820 = vmul.f32 %v1640, %v707
        %v1821 = vmul.f32 %v1644, %v711
        %v1822 = vmul.f32 %v1650, %v717
        %v1823 = vmul.f32 %v1654, %v721
        %v1824 = vmul.f32 %v1660, %v727
        %v1825 = vmul.f32 %v1664, %v731
        %v1826 = vmul.f32 %v1670, %v737
        %v1827 = vmul.f32 %v1674, %v741
        %v1828 = vmul.f32 %v1680, %v747
        %v1829 = vmul.f32 %v1684, %v751
        %1830 = vst [vmem:[%s442] sm:$0xff] %v1814
        %1831 = vst [vmem:[%s442 + $0x8] sm:$0xff] %v1815
        %1832 = vst [vmem:[%s442 + $0x10] sm:$0xff] %v1816
        %1833 = vst [vmem:[%s442 + $0x18] sm:$0xff] %v1817
        %1834 = vst [vmem:[%s442 + $0x20] sm:$0xff] %v1818
        %1835 = vst [vmem:[%s442 + $0x28] sm:$0xff] %v1819
        %1836 = vst [vmem:[%s442 + $0x30] sm:$0xff] %v1820
        %1837 = vst [vmem:[%s442 + $0x38] sm:$0xff] %v1821
        %1838 = vst [vmem:[%s442 + $0x40] sm:$0xff] %v1822
        %1839 = vst [vmem:[%s442 + $0x48] sm:$0xff] %v1823
        %1840 = vst [vmem:[%s442 + $0x50] sm:$0xff] %v1824
        %1841 = vst [vmem:[%s442 + $0x58] sm:$0xff] %v1825
        %1842 = vst [vmem:[%s442 + $0x60] sm:$0xff] %v1826
        %1843 = vst [vmem:[%s442 + $0x68] sm:$0xff] %v1827
        %1844 = vst [vmem:[%s442 + $0x70] sm:$0xff] %v1828
        %1845 = vst [vmem:[%s442 + $0x78] sm:$0xff] %v1829
        %v1846 = vmul.f32 %v1610, %v757
        %v1847 = vmul.f32 %v1614, %v761
        %v1848 = vmul.f32 %v1620, %v767
        %v1849 = vmul.f32 %v1624, %v771
        %v1850 = vmul.f32 %v1630, %v777
        %v1851 = vmul.f32 %v1634, %v781
        %v1852 = vmul.f32 %v1640, %v787
        %v1853 = vmul.f32 %v1644, %v791
        %v1854 = vmul.f32 %v1650, %v797
        %v1855 = vmul.f32 %v1654, %v801
        %v1856 = vmul.f32 %v1660, %v807
        %v1857 = vmul.f32 %v1664, %v811
        %v1858 = vmul.f32 %v1670, %v817
        %v1859 = vmul.f32 %v1674, %v821
        %v1860 = vmul.f32 %v1680, %v827
        %v1861 = vmul.f32 %v1684, %v831
        %s1862 = scalar_lea.vmem %s442, 128 [#allocation12]
        %1863 = vst [vmem:[%s1862] sm:$0xff] %v1846
        %1864 = vst [vmem:[%s1862 + $0x8] sm:$0xff] %v1847
        %1865 = vst [vmem:[%s1862 + $0x10] sm:$0xff] %v1848
        %1866 = vst [vmem:[%s1862 + $0x18] sm:$0xff] %v1849
        %1867 = vst [vmem:[%s1862 + $0x20] sm:$0xff] %v1850
        %1868 = vst [vmem:[%s1862 + $0x28] sm:$0xff] %v1851
        %1869 = vst [vmem:[%s1862 + $0x30] sm:$0xff] %v1852
        %1870 = vst [vmem:[%s1862 + $0x38] sm:$0xff] %v1853
        %1871 = vst [vmem:[%s1862 + $0x40] sm:$0xff] %v1854
        %1872 = vst [vmem:[%s1862 + $0x48] sm:$0xff] %v1855
        %1873 = vst [vmem:[%s1862 + $0x50] sm:$0xff] %v1856
        %1874 = vst [vmem:[%s1862 + $0x58] sm:$0xff] %v1857
        %1875 = vst [vmem:[%s1862 + $0x60] sm:$0xff] %v1858
        %1876 = vst [vmem:[%s1862 + $0x68] sm:$0xff] %v1859
        %1877 = vst [vmem:[%s1862 + $0x70] sm:$0xff] %v1860
        %1878 = vst [vmem:[%s1862 + $0x78] sm:$0xff] %v1861
        %v1879 = vmul.f32 %v1610, %v837
        %v1880 = vmul.f32 %v1614, %v841
        %v1881 = vmul.f32 %v1620, %v847
        %v1882 = vmul.f32 %v1624, %v851
        %v1883 = vmul.f32 %v1630, %v857
        %v1884 = vmul.f32 %v1634, %v861
        %v1885 = vmul.f32 %v1640, %v867
        %v1886 = vmul.f32 %v1644, %v871
        %v1887 = vmul.f32 %v1650, %v877
        %v1888 = vmul.f32 %v1654, %v881
        %v1889 = vmul.f32 %v1660, %v887
        %v1890 = vmul.f32 %v1664, %v891
        %v1891 = vmul.f32 %v1670, %v897
        %v1892 = vmul.f32 %v1674, %v901
        %v1893 = vmul.f32 %v1680, %v907
        %v1894 = vmul.f32 %v1684, %v911
        %s1895 = scalar_lea.vmem %s442, 256 [#allocation12]
        %1896 = vst [vmem:[%s1895] sm:$0xff] %v1879
        %1897 = vst [vmem:[%s1895 + $0x8] sm:$0xff] %v1880
        %1898 = vst [vmem:[%s1895 + $0x10] sm:$0xff] %v1881
        %1899 = vst [vmem:[%s1895 + $0x18] sm:$0xff] %v1882
        %1900 = vst [vmem:[%s1895 + $0x20] sm:$0xff] %v1883
        %1901 = vst [vmem:[%s1895 + $0x28] sm:$0xff] %v1884
        %1902 = vst [vmem:[%s1895 + $0x30] sm:$0xff] %v1885
        %1903 = vst [vmem:[%s1895 + $0x38] sm:$0xff] %v1886
        %1904 = vst [vmem:[%s1895 + $0x40] sm:$0xff] %v1887
        %1905 = vst [vmem:[%s1895 + $0x48] sm:$0xff] %v1888
        %1906 = vst [vmem:[%s1895 + $0x50] sm:$0xff] %v1889
        %1907 = vst [vmem:[%s1895 + $0x58] sm:$0xff] %v1890
        %1908 = vst [vmem:[%s1895 + $0x60] sm:$0xff] %v1891
        %1909 = vst [vmem:[%s1895 + $0x68] sm:$0xff] %v1892
        %1910 = vst [vmem:[%s1895 + $0x70] sm:$0xff] %v1893
        %1911 = vst [vmem:[%s1895 + $0x78] sm:$0xff] %v1894
        %s1912 = sand.u32 %s198, 1
        %s1913 = scalar_lea.sflag [#allocation4], %s1912
        %s1914 = sand.u32 %s198, 1
        %s1915 = smul.addr %s1914, 128
        %s1916 = scalar_lea.vmem [#allocation11], %s1915
        %s1917 = sand.u32 %s224, 1
        %s1918 = scalar_lea.sflag [#allocation13], %s1917
        %s1919 = sand.u32 %s224, 1
        %s1920 = smul.addr %s1919, 384
        %s1921 = scalar_lea.vmem [#allocation12], %s1920
        // Predicated region
        $region69: #{tpu_custom_call.1} parent=47 // pred_check
          %p1922 = pneg %p208
        $region70: #{tpu_custom_call.1} parent=47 // pred_check_branch
          %1924 = sbr.rel (%p1922) target = $region72
        $region71: #{tpu_custom_call.1} parent=47 // pred_region
          %s1925 = smul.u32 16, %s33
          %s1927 = ssub.s32 2048, 2048
          %1928 = vsyncadd %s1913, %s1927
          %s1929 = smul.addr %s1925, 128
          %s1930 = scalar_lea.hbm %s7, %s1929
          %s1931 = sshll.u32 %s1916, 4
          %s1932 = int_to_ptr.vmem [resolvable:$true] %s1931
          %1937 = dma.vmem_to_hbm [thread:$0]  %s1932, 2048, %s1930, %s1913, 128, 128, 8
        $region72: #{tpu_custom_call.1} parent=47 // pred_fallthru
          _
        // Predicated region
        $region73: #{tpu_custom_call.1} parent=47 // pred_check
          %p1938 = pneg %p234
        $region74: #{tpu_custom_call.1} parent=47 // pred_check_branch
          %1940 = sbr.rel (%p1938) target = $region76
        $region75: #{tpu_custom_call.1} parent=47 // pred_region
          #allocation17 [shape = 'u32[6]{0}', space=smem, size = 0x18, scoped, tag = 'DMA stride descriptor']
          %s1941 = smul.u32 16, %s33
          %s1943 = ssub.s32 6144, 6144
          %1944 = vsyncadd %s1918, %s1943
          %s1945 = smul.addr %s1941, 128
          %s1946 = scalar_lea.hbm %s8, %s1945
          %s1948 = sshll.u32 1, 14
          %s1949 = sxor.u32 4294967295, %s1948
          %s1952 = sshll.u32 7, 18
          %s1953 = sxor.u32 4294967295, %s1952
          %s1954 = sand.u32 0, %s1953
          %s1956 = sor.u32 %s1954, 0
          %s1958 = sshll.u32 3, 24
          %s1959 = sxor.u32 4294967295, %s1958
          %s1960 = sand.u32 %s1956, %s1959
          %s1962 = sor.u32 %s1960, 0
          %s1963 = sshll.u32 %s1921, 4
          %s1964 = int_to_ptr.vmem [resolvable:$true] %s1963
          %1970 = sst [smem:[#allocation17]] 2048
          %s1971 = scalar_lea.smem [#allocation17], 1
          %1972 = sst [smem:[%s1971]] 4096
          %s1973 = scalar_lea.smem [#allocation17], 2
          %1974 = sst [smem:[%s1973]] 16
          %s1975 = scalar_lea.smem [#allocation17], 3
          %1976 = sst [smem:[%s1975]] 128
          %s1977 = scalar_lea.smem [#allocation17], 4
          %1978 = sst [smem:[%s1977]] 128
          %s1979 = scalar_lea.smem [#allocation17], 5
          %1980 = sst [smem:[%s1979]] 8
          %1982 = dma.general %s1964, 6144, %s1946, %s1918, [#allocation16], [#allocation17], %s1962, 0
        $region76: #{tpu_custom_call.1} parent=47 // pred_fallthru
          _
      $region48: #{tpu_custom_call.1} parent=5 // pred_fallthru
        _
      %p1983 = scmp.le.s32.totalorder 2, %s28
      // Predicated region
      $region77: #{tpu_custom_call.1} parent=5 // pred_check
        %p1984 = pneg %p1983
      $region78: #{tpu_custom_call.1} parent=5 // pred_check_branch
        %1986 = sbr.rel (%p1984) target = $region80
      $region79: #{tpu_custom_call.1} parent=5 // pred_region
        %s1987 = ssub.s32 %s28, 2
        // Predicated region
        $region81: #{tpu_custom_call.1} parent=79 // pred_check
          %p1988 = pneg %p214
        $region82: #{tpu_custom_call.1} parent=79 // pred_check_branch
          %1990 = sbr.rel (%p1988) target = $region84
        $region83: #{tpu_custom_call.1} parent=79 // pred_region
          %s1991 = sand.u32 %s199, 1
          %s1992 = scalar_lea.sflag [#allocation4], %s1991
          %s1993 = sand.u32 %s199, 1
          %s1994 = smul.addr %s1993, 128
          %s1995 = scalar_lea.vmem [#allocation11], %s1994
          %1996 = dma.done %s1992, 2048
        $region84: #{tpu_custom_call.1} parent=79 // pred_fallthru
          _
        // Predicated region
        $region85: #{tpu_custom_call.1} parent=79 // pred_check
          %p1997 = pneg %p240
        $region86: #{tpu_custom_call.1} parent=79 // pred_check_branch
          %1999 = sbr.rel (%p1997) target = $region88
        $region87: #{tpu_custom_call.1} parent=79 // pred_region
          %s2000 = sand.u32 %s225, 1
          %s2001 = scalar_lea.sflag [#allocation13], %s2000
          %s2002 = sand.u32 %s225, 1
          %s2003 = smul.addr %s2002, 384
          %s2004 = scalar_lea.vmem [#allocation12], %s2003
          %2005 = dma.done %s2001, 6144
        $region88: #{tpu_custom_call.1} parent=79 // pred_fallthru
          _
      $region80: #{tpu_custom_call.1} parent=5 // pred_fallthru
        _
    $region6: #{tpu_custom_call.1} parent=1 // loop_footer
      %s32 = sadd.s32 1, %s28
    $region7: #{tpu_custom_call.1} parent=1 // loop_footer_branch
      %27 = sbr.rel target = $region3
    $region8: #{tpu_custom_call.1} parent=1 // loop_exit
      _
    %2006 = vsyncpa [#allocation3], 1
    %s2007 = scalar_lea.sflag [#allocation3], 1
    %2008 = vsyncpa %s2007, 1
    %2009 = vsyncpa [#allocation6], 1
    %s2010 = scalar_lea.sflag [#allocation6], 1
    %2011 = vsyncpa %s2010, 1
    %2012 = vsyncpa [#allocation9], 1
    %2013 = vsyncpa [#allocation4], 1
    %s2014 = scalar_lea.sflag [#allocation4], 1
    %2015 = vsyncpa %s2014, 1
    %2016 = vsyncpa [#allocation13], 1
    %s2017 = scalar_lea.sflag [#allocation13], 1
    %2018 = vsyncpa %s2017, 1

</llo_original>
